<compile_context>
chip_gen: v6e
topology: v6e:2x2x1
jax: 0.10.0
libtpu: 0.0.40
codegen_flags: <defaults>
</compile_context>

<pallas_src>
import functools
import math

import jax
import jax.numpy as jnp
from jax.experimental import pallas as pl
from jax.experimental.pallas import tpu as pltpu


def _mha_lowrank_kernel(
    q_in_ref, k_in_ref, v_in_ref, mask_ref,
    wq_ref, bq_ref, wk_ref, bk_ref, wv_ref, bv_ref, wo_ref, bo_ref,
    o_ref, *, n_heads, dim_per_head):
    """One batch element per grid step.

    q_in/k_in/v_in: (1, S, D) ; mask: (1, 1, K) ; weights pre-transposed to
    [in, out]; biases as (1, out) rows; output: (1, S, D).
    """
    xq = q_in_ref[0]                                   # (S, D)
    xk = k_in_ref[0]                                   # (K, D)
    xv = v_in_ref[0]                                   # (K, D)

    # Low-rank projections D -> d_low (three MXU matmuls, f32 accumulation).
    q = jnp.dot(xq, wq_ref[...], preferred_element_type=jnp.float32) + bq_ref[...]
    k = jnp.dot(xk, wk_ref[...], preferred_element_type=jnp.float32) + bk_ref[...]
    v = jnp.dot(xv, wv_ref[...], preferred_element_type=jnp.float32) + bv_ref[...]

    q = q / math.sqrt(dim_per_head)                    # scale as in PyTorch

    mask_row = mask_ref[0]                             # (1, K); 0 => masked
    neg_fill = jnp.finfo(jnp.float32).min              # torch.finfo(dtype).min

    # Per-head attention, statically unrolled (n_heads is small).
    ctx_heads = []
    for h in range(n_heads):
        lo = h * dim_per_head
        hi = lo + dim_per_head
        q_h = q[:, lo:hi]                              # (S, dph)
        k_h = k[:, lo:hi]                              # (K, dph)
        v_h = v[:, lo:hi]                              # (K, dph)
        scores = jnp.einsum("qd,kd->qk", q_h, k_h,
                            preferred_element_type=jnp.float32)   # (S, K)
        scores = jnp.where(mask_row == 0.0, neg_fill, scores)
        weights = jax.nn.softmax(scores, axis=-1)
        # TODO(synk): attention dropout (identity in eval mode) and the
        # optional head_mask / output_attentions paths are not implemented.
        ctx_heads.append(
            jnp.dot(weights, v_h, preferred_element_type=jnp.float32))
    context = jnp.concatenate(ctx_heads, axis=-1)      # (S, d_low)

    # Output projection d_low -> D (lane-dense store, D is a multiple of 128).
    out = jnp.dot(context, wo_ref[...],
                  preferred_element_type=jnp.float32) + bo_ref[...]
    o_ref[0] = out.astype(o_ref.dtype)


def mha_lowrank(query, key, value, mask,
                wq, bq, wk, bk, wv, bv, wo, bo, *, n_heads):
    """query/key/value: [B, S, D]; mask: [B, S] (0 = masked out).

    wq/wk/wv: [D, d_low]; wo: [d_low, D]; biases 1-D.
    Returns context: [B, S, D].
    """
    B, S, D = query.shape
    K = key.shape[1]
    d_low = wq.shape[1]
    assert d_low % n_heads == 0, "n_heads must divide the low-rank dim"
    dph = d_low // n_heads

    mask3 = mask.reshape(B, 1, K).astype(jnp.float32)
    bq2 = bq.reshape(1, d_low)
    bk2 = bk.reshape(1, d_low)
    bv2 = bv.reshape(1, d_low)
    bo2 = bo.reshape(1, D)

    itemsize = jnp.dtype(query.dtype).itemsize
    flops = B * (6 * S * D * d_low          # q/k/v projections
                 + 4 * S * K * d_low        # scores + context (all heads)
                 + 2 * S * d_low * D)       # output projection
    bytes_accessed = (3 * B * S * D + B * K
                      + 4 * D * d_low + 3 * d_low + D
                      + B * S * D) * itemsize
    cost = pl.CostEstimate(flops=flops,
                           transcendentals=B * n_heads * S * K,
                           bytes_accessed=bytes_accessed)

    kernel = functools.partial(_mha_lowrank_kernel,
                               n_heads=n_heads, dim_per_head=dph)

    # TODO(synk): for long sequences, add a second grid axis tiling the query
    # rows (flash-style) instead of holding the whole sequence per step.
    return pl.pallas_call(
        kernel,
        out_shape=jax.ShapeDtypeStruct((B, S, D), query.dtype),
        grid_spec=pltpu.PrefetchScalarGridSpec(
            num_scalar_prefetch=0,
            grid=(B,),
            in_specs=[
                pl.BlockSpec((1, S, D), lambda b: (b, 0, 0)),    # query
                pl.BlockSpec((1, K, D), lambda b: (b, 0, 0)),    # key
                pl.BlockSpec((1, K, D), lambda b: (b, 0, 0)),    # value
                pl.BlockSpec((1, 1, K), lambda b: (b, 0, 0)),    # mask
                pl.BlockSpec((D, d_low), lambda b: (0, 0)),      # Wq (resident)
                pl.BlockSpec((1, d_low), lambda b: (0, 0)),      # bq
                pl.BlockSpec((D, d_low), lambda b: (0, 0)),      # Wk
                pl.BlockSpec((1, d_low), lambda b: (0, 0)),      # bk
                pl.BlockSpec((D, d_low), lambda b: (0, 0)),      # Wv
                pl.BlockSpec((1, d_low), lambda b: (0, 0)),      # bv
                pl.BlockSpec((d_low, D), lambda b: (0, 0)),      # Wo (resident)
                pl.BlockSpec((1, D), lambda b: (0, 0)),          # bo
            ],
            out_specs=pl.BlockSpec((1, S, D), lambda b: (b, 0, 0)),
        ),
        compiler_params=pltpu.CompilerParams(
            dimension_semantics=("parallel",),
            vmem_limit_bytes=32 * 1024 * 1024,   # explicit; headroom on v7x
        ),
        cost_estimate=cost,
    )(query, key, value, mask3, wq, bq2, wk, bk2, wv, bv2, wo, bo2)


def _reference(query, key, value, mask, wq, bq, wk, bk, wv, bv, wo, bo, *, n_heads):
    """Pure-JAX transcription of the PyTorch forward."""
    B, S, D = query.shape
    K = key.shape[1]
    d_low = wq.shape[1]
    dph = d_low // n_heads

    def shape(x):
        return x.reshape(B, -1, n_heads, dph).transpose(0, 2, 1, 3)

    q = shape(query @ wq + bq)
    k = shape(key @ wk + bk)
    v = shape(value @ wv + bv)
    q = q / math.sqrt(dph)
    scores = jnp.einsum("bhqd,bhkd->bhqk", q, k)
    m = (mask == 0).reshape(B, 1, 1, K)
    scores = jnp.where(m, jnp.finfo(scores.dtype).min, scores)
    w = jax.nn.softmax(scores, axis=-1)
    ctx = jnp.einsum("bhqk,bhkd->bhqd", w, v)
    ctx = ctx.transpose(0, 2, 1, 3).reshape(B, S, d_low)
    return ctx @ wo + bo


if __name__ == "__main__":
    # Small config consistent with MultiHeadSelfAttentionLowRank:
    # config.dim = 128, n_heads = 4, compression = 2
    #   -> low-rank dim = 64, attention_head_size = 16.
    B, S, D = 2, 8, 128
    N_HEADS = 4
    COMPRESSION = 2
    D_LOW = D // COMPRESSION

    root = jax.random.PRNGKey(0)
    ks = jax.random.split(root, 11)
    query = jax.random.normal(ks[0], (B, S, D), dtype=jnp.float32)
    key_in = jax.random.normal(ks[1], (B, S, D), dtype=jnp.float32)
    value = jax.random.normal(ks[2], (B, S, D), dtype=jnp.float32)

    # nn.Linear weights stored pre-transposed to [in, out].
    wq = jax.random.normal(ks[3], (D, D_LOW), dtype=jnp.float32) * 0.05
    wk = jax.random.normal(ks[4], (D, D_LOW), dtype=jnp.float32) * 0.05
    wv = jax.random.normal(ks[5], (D, D_LOW), dtype=jnp.float32) * 0.05
    wo = jax.random.normal(ks[6], (D_LOW, D), dtype=jnp.float32) * 0.05
    bq = jax.random.normal(ks[7], (D_LOW,), dtype=jnp.float32) * 0.05
    bk = jax.random.normal(ks[8], (D_LOW,), dtype=jnp.float32) * 0.05
    bv = jax.random.normal(ks[9], (D_LOW,), dtype=jnp.float32) * 0.05
    bo = jax.random.normal(ks[10], (D,), dtype=jnp.float32) * 0.05

    # Padding mask: batch 0 fully valid, batch 1 valid for the first 5 tokens.
    lengths = jnp.array([S, 5], dtype=jnp.int32)
    mask = (jnp.arange(S)[None, :] < lengths[:, None]).astype(jnp.float32)

    out = mha_lowrank(query, key_in, value, mask,
                      wq, bq, wk, bk, wv, bv, wo, bo, n_heads=N_HEADS)
    out = jax.block_until_ready(out)

    ref = _reference(query, key_in, value, mask,
                     wq, bq, wk, bk, wv, bv, wo, bo, n_heads=N_HEADS)
    assert out.shape == (B, S, D)
    assert jnp.allclose(out, ref, atol=1e-4, rtol=1e-4), "mismatch vs reference"

    print("KERNEL_OK")
</pallas_src>

<mosaic_0001>
module attributes {stable_mosaic.version = 11 : i64} {
  func.func @_mha_lowrank_kernel(%arg0: i32, %arg1: memref<1x8x128xf32, #tpu.memory_space<vmem>>, %arg2: memref<1x8x128xf32, #tpu.memory_space<vmem>>, %arg3: memref<1x8x128xf32, #tpu.memory_space<vmem>>, %arg4: memref<1x1x8xf32, #tpu.memory_space<vmem>>, %arg5: memref<128x64xf32, #tpu.memory_space<vmem>>, %arg6: memref<1x64xf32, #tpu.memory_space<vmem>>, %arg7: memref<128x64xf32, #tpu.memory_space<vmem>>, %arg8: memref<1x64xf32, #tpu.memory_space<vmem>>, %arg9: memref<128x64xf32, #tpu.memory_space<vmem>>, %arg10: memref<1x64xf32, #tpu.memory_space<vmem>>, %arg11: memref<64x128xf32, #tpu.memory_space<vmem>>, %arg12: memref<1x128xf32, #tpu.memory_space<vmem>>, %arg13: memref<1x8x128xf32, #tpu.memory_space<vmem>>) attributes {dimension_semantics = [#tpu.dimension_semantics<parallel>], iteration_bounds = array<i64: 2>, scalar_prefetch = 0 : i64, scratch_operands = 0 : i64, tpu.core_type = #tpu.core_type<tc>, window_params = [{transform_indices = @transform_0, window_bounds = array<i64: 1, 8, 128>}, {transform_indices = @transform_1, window_bounds = array<i64: 1, 8, 128>}, {transform_indices = @transform_2, window_bounds = array<i64: 1, 8, 128>}, {transform_indices = @transform_3, window_bounds = array<i64: 1, 1, 8>}, {pipeline_mode = #tpu.pipeline_mode<synchronous>, transform_indices = @transform_4, window_bounds = array<i64: 128, 64>}, {pipeline_mode = #tpu.pipeline_mode<synchronous>, transform_indices = @transform_5, window_bounds = array<i64: 1, 64>}, {pipeline_mode = #tpu.pipeline_mode<synchronous>, transform_indices = @transform_6, window_bounds = array<i64: 128, 64>}, {pipeline_mode = #tpu.pipeline_mode<synchronous>, transform_indices = @transform_7, window_bounds = array<i64: 1, 64>}, {pipeline_mode = #tpu.pipeline_mode<synchronous>, transform_indices = @transform_8, window_bounds = array<i64: 128, 64>}, {pipeline_mode = #tpu.pipeline_mode<synchronous>, transform_indices = @transform_9, window_bounds = array<i64: 1, 64>}, {pipeline_mode = #tpu.pipeline_mode<synchronous>, transform_indices = @transform_10, window_bounds = array<i64: 64, 128>}, {pipeline_mode = #tpu.pipeline_mode<synchronous>, transform_indices = @transform_11, window_bounds = array<i64: 1, 128>}, {transform_indices = @transform_12, window_bounds = array<i64: 1, 8, 128>}]} {
    %c0 = arith.constant 0 : index
    %c0_0 = arith.constant 0 : index
    %c0_1 = arith.constant 0 : index
    %0 = vector.load %arg1[%c0, %c0_0, %c0_1] : memref<1x8x128xf32, #tpu.memory_space<vmem>>, vector<1x8x128xf32>
    %1 = vector.shape_cast %0 : vector<1x8x128xf32> to vector<8x128xf32>
    %c0_2 = arith.constant 0 : index
    %c0_3 = arith.constant 0 : index
    %c0_4 = arith.constant 0 : index
    %2 = vector.load %arg2[%c0_2, %c0_3, %c0_4] : memref<1x8x128xf32, #tpu.memory_space<vmem>>, vector<1x8x128xf32>
    %3 = vector.shape_cast %2 : vector<1x8x128xf32> to vector<8x128xf32>
    %c0_5 = arith.constant 0 : index
    %c0_6 = arith.constant 0 : index
    %c0_7 = arith.constant 0 : index
    %4 = vector.load %arg3[%c0_5, %c0_6, %c0_7] : memref<1x8x128xf32, #tpu.memory_space<vmem>>, vector<1x8x128xf32>
    %5 = vector.shape_cast %4 : vector<1x8x128xf32> to vector<8x128xf32>
    %c0_8 = arith.constant 0 : index
    %c0_9 = arith.constant 0 : index
    %6 = vector.load %arg5[%c0_8, %c0_9] : memref<128x64xf32, #tpu.memory_space<vmem>>, vector<128x64xf32>
    %cst = arith.constant dense<0.000000e+00> : vector<8x64xf32>
    %7 = tpu.matmul %1, %6, %cst {dimension_numbers = #tpu.dot_dimension_numbers<[1], [0], [0], [1], [0, 0, 1, 1], [], []>} : vector<8x128xf32>, vector<128x64xf32>, vector<8x64xf32> -> vector<8x64xf32>
    %c0_10 = arith.constant 0 : index
    %c0_11 = arith.constant 0 : index
    %8 = vector.load %arg6[%c0_10, %c0_11] : memref<1x64xf32, #tpu.memory_space<vmem>>, vector<1x64xf32>
    %9 = vector.broadcast %8 : vector<1x64xf32> to vector<8x64xf32>
    %10 = arith.addf %7, %9 : vector<8x64xf32>
    %c0_12 = arith.constant 0 : index
    %c0_13 = arith.constant 0 : index
    %11 = vector.load %arg7[%c0_12, %c0_13] : memref<128x64xf32, #tpu.memory_space<vmem>>, vector<128x64xf32>
    %cst_14 = arith.constant dense<0.000000e+00> : vector<8x64xf32>
    %12 = tpu.matmul %3, %11, %cst_14 {dimension_numbers = #tpu.dot_dimension_numbers<[1], [0], [0], [1], [0, 0, 1, 1], [], []>} : vector<8x128xf32>, vector<128x64xf32>, vector<8x64xf32> -> vector<8x64xf32>
    %c0_15 = arith.constant 0 : index
    %c0_16 = arith.constant 0 : index
    %13 = vector.load %arg8[%c0_15, %c0_16] : memref<1x64xf32, #tpu.memory_space<vmem>>, vector<1x64xf32>
    %14 = vector.broadcast %13 : vector<1x64xf32> to vector<8x64xf32>
    %15 = arith.addf %12, %14 : vector<8x64xf32>
    %c0_17 = arith.constant 0 : index
    %c0_18 = arith.constant 0 : index
    %16 = vector.load %arg9[%c0_17, %c0_18] : memref<128x64xf32, #tpu.memory_space<vmem>>, vector<128x64xf32>
    %cst_19 = arith.constant dense<0.000000e+00> : vector<8x64xf32>
    %17 = tpu.matmul %5, %16, %cst_19 {dimension_numbers = #tpu.dot_dimension_numbers<[1], [0], [0], [1], [0, 0, 1, 1], [], []>} : vector<8x128xf32>, vector<128x64xf32>, vector<8x64xf32> -> vector<8x64xf32>
    %c0_20 = arith.constant 0 : index
    %c0_21 = arith.constant 0 : index
    %18 = vector.load %arg10[%c0_20, %c0_21] : memref<1x64xf32, #tpu.memory_space<vmem>>, vector<1x64xf32>
    %19 = vector.broadcast %18 : vector<1x64xf32> to vector<8x64xf32>
    %20 = arith.addf %17, %19 : vector<8x64xf32>
    %cst_22 = arith.constant 4.000000e+00 : f32
    %21 = vector.broadcast %cst_22 : f32 to vector<8x64xf32>
    %22 = arith.divf %10, %21 : vector<8x64xf32>
    %c0_23 = arith.constant 0 : index
    %c0_24 = arith.constant 0 : index
    %c0_25 = arith.constant 0 : index
    %23 = vector.load %arg4[%c0_23, %c0_24, %c0_25] : memref<1x1x8xf32, #tpu.memory_space<vmem>>, vector<1x1x8xf32>
    %24 = vector.shape_cast %23 : vector<1x1x8xf32> to vector<1x8xf32>
    %25 = vector.extract_strided_slice %22 {offsets = [0, 0], sizes = [8, 16], strides = [1, 1]} : vector<8x64xf32> to vector<8x16xf32>
    %26 = vector.extract_strided_slice %15 {offsets = [0, 0], sizes = [8, 16], strides = [1, 1]} : vector<8x64xf32> to vector<8x16xf32>
    %27 = vector.extract_strided_slice %20 {offsets = [0, 0], sizes = [8, 16], strides = [1, 1]} : vector<8x64xf32> to vector<8x16xf32>
    "tpu.trace_start"() <{level = 10 : i32, message = "qd,kd->qk"}> : () -> ()
    %cst_26 = arith.constant dense<0.000000e+00> : vector<8x8xf32>
    %28 = tpu.matmul %25, %26, %cst_26 {dimension_numbers = #tpu.dot_dimension_numbers<[1], [1], [0], [0], [0, 0, 1, 0], [], []>} : vector<8x16xf32>, vector<8x16xf32>, vector<8x8xf32> -> vector<8x8xf32>
    %cst_27 = arith.constant 0.000000e+00 : f32
    "tpu.trace_stop"() : () -> ()
    %29 = vector.broadcast %cst_27 : f32 to vector<1x8xf32>
    %30 = arith.cmpf oeq, %24, %29 : vector<1x8xf32>
    %cst_28 = arith.constant -3.40282347E+38 : f32
    %31 = vector.shape_cast %30 : vector<1x8xi1> to vector<1x8xi1>
    %32 = vector.broadcast %31 : vector<1x8xi1> to vector<8x8xi1>
    %33 = vector.broadcast %cst_28 : f32 to vector<8x8xf32>
    %34 = arith.select %32, %33, %28 : vector<8x8xi1>, vector<8x8xf32>
    %cst_29 = arith.constant dense<0xFF800000> : vector<8xf32>
    %35 = vector.multi_reduction <maximumf>, %34, %cst_29 [1] : vector<8x8xf32> to vector<8xf32>
    %cst_30 = arith.constant 0xFF800000 : f32
    %36 = vector.broadcast %cst_30 : f32 to vector<8xf32>
    %37 = arith.maximumf %36, %35 : vector<8xf32>
    %38 = vector.shape_cast %37 : vector<8xf32> to vector<8x1xf32>
    %39 = vector.broadcast %38 : vector<8x1xf32> to vector<8x8xf32>
    %40 = arith.subf %34, %39 : vector<8x8xf32>
    %41 = math.exp %40 : vector<8x8xf32>
    %cst_31 = arith.constant dense<0.000000e+00> : vector<8xf32>
    %42 = vector.multi_reduction <add>, %41, %cst_31 [1] : vector<8x8xf32> to vector<8xf32>
    %43 = vector.shape_cast %42 : vector<8xf32> to vector<8x1xf32>
    %44 = vector.broadcast %43 : vector<8x1xf32> to vector<8x8xf32>
    %45 = arith.divf %41, %44 : vector<8x8xf32>
    %cst_32 = arith.constant dense<0.000000e+00> : vector<8x16xf32>
    %46 = tpu.matmul %45, %27, %cst_32 {dimension_numbers = #tpu.dot_dimension_numbers<[1], [0], [0], [1], [0, 0, 1, 1], [], []>} : vector<8x8xf32>, vector<8x16xf32>, vector<8x16xf32> -> vector<8x16xf32>
    %47 = vector.extract_strided_slice %22 {offsets = [0, 16], sizes = [8, 16], strides = [1, 1]} : vector<8x64xf32> to vector<8x16xf32>
    %48 = vector.extract_strided_slice %15 {offsets = [0, 16], sizes = [8, 16], strides = [1, 1]} : vector<8x64xf32> to vector<8x16xf32>
    %49 = vector.extract_strided_slice %20 {offsets = [0, 16], sizes = [8, 16], strides = [1, 1]} : vector<8x64xf32> to vector<8x16xf32>
    "tpu.trace_start"() <{level = 10 : i32, message = "qd,kd->qk"}> : () -> ()
    %cst_33 = arith.constant dense<0.000000e+00> : vector<8x8xf32>
    %50 = tpu.matmul %47, %48, %cst_33 {dimension_numbers = #tpu.dot_dimension_numbers<[1], [1], [0], [0], [0, 0, 1, 0], [], []>} : vector<8x16xf32>, vector<8x16xf32>, vector<8x8xf32> -> vector<8x8xf32>
    %cst_34 = arith.constant 0.000000e+00 : f32
    "tpu.trace_stop"() : () -> ()
    %51 = vector.broadcast %cst_34 : f32 to vector<1x8xf32>
    %52 = arith.cmpf oeq, %24, %51 : vector<1x8xf32>
    %cst_35 = arith.constant -3.40282347E+38 : f32
    %53 = vector.shape_cast %52 : vector<1x8xi1> to vector<1x8xi1>
    %54 = vector.broadcast %53 : vector<1x8xi1> to vector<8x8xi1>
    %55 = vector.broadcast %cst_35 : f32 to vector<8x8xf32>
    %56 = arith.select %54, %55, %50 : vector<8x8xi1>, vector<8x8xf32>
    %cst_36 = arith.constant dense<0xFF800000> : vector<8xf32>
    %57 = vector.multi_reduction <maximumf>, %56, %cst_36 [1] : vector<8x8xf32> to vector<8xf32>
    %cst_37 = arith.constant 0xFF800000 : f32
    %58 = vector.broadcast %cst_37 : f32 to vector<8xf32>
    %59 = arith.maximumf %58, %57 : vector<8xf32>
    %60 = vector.shape_cast %59 : vector<8xf32> to vector<8x1xf32>
    %61 = vector.broadcast %60 : vector<8x1xf32> to vector<8x8xf32>
    %62 = arith.subf %56, %61 : vector<8x8xf32>
    %63 = math.exp %62 : vector<8x8xf32>
    %cst_38 = arith.constant dense<0.000000e+00> : vector<8xf32>
    %64 = vector.multi_reduction <add>, %63, %cst_38 [1] : vector<8x8xf32> to vector<8xf32>
    %65 = vector.shape_cast %64 : vector<8xf32> to vector<8x1xf32>
    %66 = vector.broadcast %65 : vector<8x1xf32> to vector<8x8xf32>
    %67 = arith.divf %63, %66 : vector<8x8xf32>
    %cst_39 = arith.constant dense<0.000000e+00> : vector<8x16xf32>
    %68 = tpu.matmul %67, %49, %cst_39 {dimension_numbers = #tpu.dot_dimension_numbers<[1], [0], [0], [1], [0, 0, 1, 1], [], []>} : vector<8x8xf32>, vector<8x16xf32>, vector<8x16xf32> -> vector<8x16xf32>
    %69 = vector.extract_strided_slice %22 {offsets = [0, 32], sizes = [8, 16], strides = [1, 1]} : vector<8x64xf32> to vector<8x16xf32>
    %70 = vector.extract_strided_slice %15 {offsets = [0, 32], sizes = [8, 16], strides = [1, 1]} : vector<8x64xf32> to vector<8x16xf32>
    %71 = vector.extract_strided_slice %20 {offsets = [0, 32], sizes = [8, 16], strides = [1, 1]} : vector<8x64xf32> to vector<8x16xf32>
    "tpu.trace_start"() <{level = 10 : i32, message = "qd,kd->qk"}> : () -> ()
    %cst_40 = arith.constant dense<0.000000e+00> : vector<8x8xf32>
    %72 = tpu.matmul %69, %70, %cst_40 {dimension_numbers = #tpu.dot_dimension_numbers<[1], [1], [0], [0], [0, 0, 1, 0], [], []>} : vector<8x16xf32>, vector<8x16xf32>, vector<8x8xf32> -> vector<8x8xf32>
    %cst_41 = arith.constant 0.000000e+00 : f32
    "tpu.trace_stop"() : () -> ()
    %73 = vector.broadcast %cst_41 : f32 to vector<1x8xf32>
    %74 = arith.cmpf oeq, %24, %73 : vector<1x8xf32>
    %cst_42 = arith.constant -3.40282347E+38 : f32
    %75 = vector.shape_cast %74 : vector<1x8xi1> to vector<1x8xi1>
    %76 = vector.broadcast %75 : vector<1x8xi1> to vector<8x8xi1>
    %77 = vector.broadcast %cst_42 : f32 to vector<8x8xf32>
    %78 = arith.select %76, %77, %72 : vector<8x8xi1>, vector<8x8xf32>
    %cst_43 = arith.constant dense<0xFF800000> : vector<8xf32>
    %79 = vector.multi_reduction <maximumf>, %78, %cst_43 [1] : vector<8x8xf32> to vector<8xf32>
    %cst_44 = arith.constant 0xFF800000 : f32
    %80 = vector.broadcast %cst_44 : f32 to vector<8xf32>
    %81 = arith.maximumf %80, %79 : vector<8xf32>
    %82 = vector.shape_cast %81 : vector<8xf32> to vector<8x1xf32>
    %83 = vector.broadcast %82 : vector<8x1xf32> to vector<8x8xf32>
    %84 = arith.subf %78, %83 : vector<8x8xf32>
    %85 = math.exp %84 : vector<8x8xf32>
    %cst_45 = arith.constant dense<0.000000e+00> : vector<8xf32>
    %86 = vector.multi_reduction <add>, %85, %cst_45 [1] : vector<8x8xf32> to vector<8xf32>
    %87 = vector.shape_cast %86 : vector<8xf32> to vector<8x1xf32>
    %88 = vector.broadcast %87 : vector<8x1xf32> to vector<8x8xf32>
    %89 = arith.divf %85, %88 : vector<8x8xf32>
    %cst_46 = arith.constant dense<0.000000e+00> : vector<8x16xf32>
    %90 = tpu.matmul %89, %71, %cst_46 {dimension_numbers = #tpu.dot_dimension_numbers<[1], [0], [0], [1], [0, 0, 1, 1], [], []>} : vector<8x8xf32>, vector<8x16xf32>, vector<8x16xf32> -> vector<8x16xf32>
    %91 = vector.extract_strided_slice %22 {offsets = [0, 48], sizes = [8, 16], strides = [1, 1]} : vector<8x64xf32> to vector<8x16xf32>
    %92 = vector.extract_strided_slice %15 {offsets = [0, 48], sizes = [8, 16], strides = [1, 1]} : vector<8x64xf32> to vector<8x16xf32>
    %93 = vector.extract_strided_slice %20 {offsets = [0, 48], sizes = [8, 16], strides = [1, 1]} : vector<8x64xf32> to vector<8x16xf32>
    "tpu.trace_start"() <{level = 10 : i32, message = "qd,kd->qk"}> : () -> ()
    %cst_47 = arith.constant dense<0.000000e+00> : vector<8x8xf32>
    %94 = tpu.matmul %91, %92, %cst_47 {dimension_numbers = #tpu.dot_dimension_numbers<[1], [1], [0], [0], [0, 0, 1, 0], [], []>} : vector<8x16xf32>, vector<8x16xf32>, vector<8x8xf32> -> vector<8x8xf32>
    %cst_48 = arith.constant 0.000000e+00 : f32
    "tpu.trace_stop"() : () -> ()
    %95 = vector.broadcast %cst_48 : f32 to vector<1x8xf32>
    %96 = arith.cmpf oeq, %24, %95 : vector<1x8xf32>
    %cst_49 = arith.constant -3.40282347E+38 : f32
    %97 = vector.shape_cast %96 : vector<1x8xi1> to vector<1x8xi1>
    %98 = vector.broadcast %97 : vector<1x8xi1> to vector<8x8xi1>
    %99 = vector.broadcast %cst_49 : f32 to vector<8x8xf32>
    %100 = arith.select %98, %99, %94 : vector<8x8xi1>, vector<8x8xf32>
    %cst_50 = arith.constant dense<0xFF800000> : vector<8xf32>
    %101 = vector.multi_reduction <maximumf>, %100, %cst_50 [1] : vector<8x8xf32> to vector<8xf32>
    %cst_51 = arith.constant 0xFF800000 : f32
    %102 = vector.broadcast %cst_51 : f32 to vector<8xf32>
    %103 = arith.maximumf %102, %101 : vector<8xf32>
    %104 = vector.shape_cast %103 : vector<8xf32> to vector<8x1xf32>
    %105 = vector.broadcast %104 : vector<8x1xf32> to vector<8x8xf32>
    %106 = arith.subf %100, %105 : vector<8x8xf32>
    %107 = math.exp %106 : vector<8x8xf32>
    %cst_52 = arith.constant dense<0.000000e+00> : vector<8xf32>
    %108 = vector.multi_reduction <add>, %107, %cst_52 [1] : vector<8x8xf32> to vector<8xf32>
    %109 = vector.shape_cast %108 : vector<8xf32> to vector<8x1xf32>
    %110 = vector.broadcast %109 : vector<8x1xf32> to vector<8x8xf32>
    %111 = arith.divf %107, %110 : vector<8x8xf32>
    %cst_53 = arith.constant dense<0.000000e+00> : vector<8x16xf32>
    %112 = tpu.matmul %111, %93, %cst_53 {dimension_numbers = #tpu.dot_dimension_numbers<[1], [0], [0], [1], [0, 0, 1, 1], [], []>} : vector<8x8xf32>, vector<8x16xf32>, vector<8x16xf32> -> vector<8x16xf32>
    %113 = tpu.concatenate %46, %68, %90, %112 in 1 : vector<8x16xf32>, vector<8x16xf32>, vector<8x16xf32>, vector<8x16xf32> -> vector<8x64xf32>
    %c0_54 = arith.constant 0 : index
    %c0_55 = arith.constant 0 : index
    %114 = vector.load %arg11[%c0_54, %c0_55] : memref<64x128xf32, #tpu.memory_space<vmem>>, vector<64x128xf32>
    %cst_56 = arith.constant dense<0.000000e+00> : vector<8x128xf32>
    %115 = tpu.matmul %113, %114, %cst_56 {dimension_numbers = #tpu.dot_dimension_numbers<[1], [0], [0], [1], [0, 0, 1, 1], [], []>} : vector<8x64xf32>, vector<64x128xf32>, vector<8x128xf32> -> vector<8x128xf32>
    %c0_57 = arith.constant 0 : index
    %c0_58 = arith.constant 0 : index
    %116 = vector.load %arg12[%c0_57, %c0_58] : memref<1x128xf32, #tpu.memory_space<vmem>>, vector<1x128xf32>
    %117 = vector.broadcast %116 : vector<1x128xf32> to vector<8x128xf32>
    %118 = arith.addf %115, %117 : vector<8x128xf32>
    %c0_59 = arith.constant 0 : index
    %c0_60 = arith.constant 0 : index
    %c0_61 = arith.constant 0 : index
    %119 = vector.load %arg13[%c0_59, %c0_60, %c0_61] : memref<1x8x128xf32, #tpu.memory_space<vmem>>, vector<1x8x128xf32>
    %120 = vector.shape_cast %119 : vector<1x8x128xf32> to vector<8x128xf32>
    %121 = vector.shape_cast %118 : vector<8x128xf32> to vector<1x8x128xf32>
    tpu.vector_store %arg13[%c0_59, %c0_60, %c0_61], %121 {strides = array<i32>} : memref<1x8x128xf32, #tpu.memory_space<vmem>>, vector<1x8x128xf32>,
    return
  }
  func.func @transform_0(%arg0: i32) -> (i32, i32, i32) {
    %c0_i32 = arith.constant 0 : i32
    %c0_i32_0 = arith.constant 0 : i32
    %c0_i32_1 = arith.constant 0 : i32
    return %arg0, %c0_i32, %c0_i32_0 : i32, i32, i32
  }
  func.func @transform_1(%arg0: i32) -> (i32, i32, i32) {
    %c0_i32 = arith.constant 0 : i32
    %c0_i32_0 = arith.constant 0 : i32
    %c0_i32_1 = arith.constant 0 : i32
    return %arg0, %c0_i32, %c0_i32_0 : i32, i32, i32
  }
  func.func @transform_2(%arg0: i32) -> (i32, i32, i32) {
    %c0_i32 = arith.constant 0 : i32
    %c0_i32_0 = arith.constant 0 : i32
    %c0_i32_1 = arith.constant 0 : i32
    return %arg0, %c0_i32, %c0_i32_0 : i32, i32, i32
  }
  func.func @transform_3(%arg0: i32) -> (i32, i32, i32) {
    %c0_i32 = arith.constant 0 : i32
    %c0_i32_0 = arith.constant 0 : i32
    %c0_i32_1 = arith.constant 0 : i32
    return %arg0, %c0_i32, %c0_i32_0 : i32, i32, i32
  }
  func.func @transform_4(%arg0: i32) -> (i32, i32) {
    %c0_i32 = arith.constant 0 : i32
    %c0_i32_0 = arith.constant 0 : i32
    %c0_i32_1 = arith.constant 0 : i32
    return %c0_i32, %c0_i32_0 : i32, i32
  }
  func.func @transform_5(%arg0: i32) -> (i32, i32) {
    %c0_i32 = arith.constant 0 : i32
    %c0_i32_0 = arith.constant 0 : i32
    %c0_i32_1 = arith.constant 0 : i32
    return %c0_i32, %c0_i32_0 : i32, i32
  }
  func.func @transform_6(%arg0: i32) -> (i32, i32) {
    %c0_i32 = arith.constant 0 : i32
    %c0_i32_0 = arith.constant 0 : i32
    %c0_i32_1 = arith.constant 0 : i32
    return %c0_i32, %c0_i32_0 : i32, i32
  }
  func.func @transform_7(%arg0: i32) -> (i32, i32) {
    %c0_i32 = arith.constant 0 : i32
    %c0_i32_0 = arith.constant 0 : i32
    %c0_i32_1 = arith.constant 0 : i32
    return %c0_i32, %c0_i32_0 : i32, i32
  }
  func.func @transform_8(%arg0: i32) -> (i32, i32) {
    %c0_i32 = arith.constant 0 : i32
    %c0_i32_0 = arith.constant 0 : i32
    %c0_i32_1 = arith.constant 0 : i32
    return %c0_i32, %c0_i32_0 : i32, i32
  }
  func.func @transform_9(%arg0: i32) -> (i32, i32) {
    %c0_i32 = arith.constant 0 : i32
    %c0_i32_0 = arith.constant 0 : i32
    %c0_i32_1 = arith.constant 0 : i32
    return %c0_i32, %c0_i32_0 : i32, i32
  }
  func.func @transform_10(%arg0: i32) -> (i32, i32) {
    %c0_i32 = arith.constant 0 : i32
    %c0_i32_0 = arith.constant 0 : i32
    %c0_i32_1 = arith.constant 0 : i32
    return %c0_i32, %c0_i32_0 : i32, i32
  }
  func.func @transform_11(%arg0: i32) -> (i32, i32) {
    %c0_i32 = arith.constant 0 : i32
    %c0_i32_0 = arith.constant 0 : i32
    %c0_i32_1 = arith.constant 0 : i32
    return %c0_i32, %c0_i32_0 : i32, i32
  }
  func.func @transform_12(%arg0: i32) -> (i32, i32, i32) {
    %c0_i32 = arith.constant 0 : i32
    %c0_i32_0 = arith.constant 0 : i32
    %c0_i32_1 = arith.constant 0 : i32
    return %arg0, %c0_i32, %c0_i32_0 : i32, i32, i32
  }
}

</mosaic_0001>

<llo_original>
// kernel: tpu_custom_call.1
$region0: #{tpu_custom_call.1}
  #allocation0 [shape = 'u32[]', space=smem, size = 0x4, offset = 0x4, fixed_abs, tag = 'smem constant byte address 0x4 - core index']
  #allocation1 [shape = 'u32[144,128]{1,0:T(1,128)}', space=vmem, size = 0x12000, scoped, tag = 'internal scratch']
  %s0 = inlined_call_operand.vmem [shape: f32[2,8,128], index: 0, kind: input, shape index: {}]
  %s1 = inlined_call_operand.vmem [shape: f32[2,8,128], index: 1, kind: input, shape index: {}]
  %s2 = inlined_call_operand.vmem [shape: f32[2,8,128], index: 2, kind: input, shape index: {}]
  %s3 = inlined_call_operand.vmem [shape: f32[2,1,8], index: 3, kind: input, shape index: {}]
  %s4 = inlined_call_operand.vmem [shape: f32[128,64], index: 4, kind: input, shape index: {}]
  %s5 = inlined_call_operand.vmem [shape: f32[1,64], index: 5, kind: input, shape index: {}]
  %s6 = inlined_call_operand.vmem [shape: f32[128,64], index: 6, kind: input, shape index: {}]
  %s7 = inlined_call_operand.vmem [shape: f32[1,64], index: 7, kind: input, shape index: {}]
  %s8 = inlined_call_operand.vmem [shape: f32[128,64], index: 8, kind: input, shape index: {}]
  %s9 = inlined_call_operand.vmem [shape: f32[1,64], index: 9, kind: input, shape index: {}]
  %s10 = inlined_call_operand.vmem [shape: f32[64,128], index: 10, kind: input, shape index: {}]
  %s11 = inlined_call_operand.vmem [shape: f32[1,128], index: 11, kind: input, shape index: {}]
  %s12 = inlined_call_operand.hbm [shape: f32[2,8,128], index: 12, kind: output, shape index: {}]
  %s13 = sld [smem:[#allocation0]]
  $region81: #{tpu_custom_call.1} parent=0
    _
  %s15 = ssub.s32 1, %s13
  %s16 = scalar_select 0, %s15, %s13
  $region1: #{tpu_custom_call.1} parent=0
    #allocation2 [shape = 'u8[8192]{0}', space=vmem, size = 0x2000, scoped, tag = 'output window, operand 0']
    #allocation3 [shape = 's32[2]{0}', space=sflag, size = 0x8, scoped, tag = 'scoped memory for tpu_custom_call.1']
    %17 = vsyncpa [#allocation3], 0
    %s18 = scalar_lea.sflag [#allocation3], 1
    %19 = vsyncpa %s18, 0
    loop: start=0, step=1, limit=4
    $region2: #{tpu_custom_call.1} parent=1 // loop_pre_header
      _
    $region3: #{tpu_custom_call.1} parent=1 // loop_header
      %s21 = sphi 0, %s25
      %p22 = scmp.ge.s32.totalorder %s21, 4
      %s31 = sphi 0, %s33
      %s34 = sphi 0, %s31
      %s35 = sphi 0, %s34
      %s51 = sphi 0, %s35
      %s57 = sphi 0, %s59
      %s60 = sphi 0, %s57
      %s61 = sphi 0, %s60
      %s77 = sphi 0, %s61
      %s83 = sphi 0, %s85
      %s86 = sphi 0, %s83
      %s87 = sphi 0, %s86
      %s103 = sphi 0, %s87
      %s109 = sphi 0, %s111
      %s112 = sphi 0, %s109
      %s113 = sphi 0, %s112
      %s129 = sphi 0, %s113
      %s133 = sphi 0, %s133
      %s135 = sphi 0, %s133
      %s136 = sphi 0, %s135
      %s150 = sphi 0, %s136
      %s154 = sphi 0, %s154
      %s156 = sphi 0, %s154
      %s157 = sphi 0, %s156
      %s171 = sphi 0, %s157
      %s175 = sphi 0, %s175
      %s177 = sphi 0, %s175
      %s178 = sphi 0, %s177
      %s192 = sphi 0, %s178
      %s196 = sphi 0, %s196
      %s198 = sphi 0, %s196
      %s199 = sphi 0, %s198
      %s213 = sphi 0, %s199
      %s217 = sphi 0, %s217
      %s219 = sphi 0, %s217
      %s220 = sphi 0, %s219
      %s234 = sphi 0, %s220
      %s238 = sphi 0, %s238
      %s240 = sphi 0, %s238
      %s241 = sphi 0, %s240
      %s255 = sphi 0, %s241
      %s259 = sphi 0, %s259
      %s261 = sphi 0, %s259
      %s262 = sphi 0, %s261
      %s276 = sphi 0, %s262
      %s280 = sphi 0, %s280
      %s282 = sphi 0, %s280
      %s283 = sphi 0, %s282
      %s297 = sphi 0, %s283
      %s303 = sphi 0, %s305
      %s306 = sphi 0, %s303
      %s307 = sphi 0, %s306
      %s323 = sphi 0, %s307
    $region4: #{tpu_custom_call.1} parent=1 // loop_header_branch
      %24 = sbr.rel (%p22) target = $region8
    $region5: #{tpu_custom_call.1} parent=1 // loop_body
      %s26 = ssub.s32 %s21, 1
      %s27 = ssub.s32 %s21, 2
      %s28 = sadd.s32 %s21, 1
      %s29 = ssub.s32 %s21, %s28
      %p30 = scmp.eq.s32.totalorder %s29, 0
      %s32 = sadd.s32 %s31, 1
      %s33 = scalar_select %p30, %s31, %s32
      %p36 = pneg %p30
      %p37 = scmp.eq.s32.totalorder %s21, 1
      %p38 = por %p36, %p37
      %p39 = scmp.ne.s32.totalorder %s31, %s34
      %p40 = scmp.eq.s32.totalorder %s21, 0
      %p41 = por %p39, %p40
      %p42 = scmp.ne.s32.totalorder %s31, %s34
      %p43 = scmp.eq.s32.totalorder %s26, 1
      %p44 = por %p42, %p43
      %p45 = scmp.ne.s32.totalorder %s34, %s35
      %p46 = scmp.eq.s32.totalorder %s26, 0
      %p47 = por %p45, %p46
      %p48 = scmp.ne.s32.totalorder %s34, %s35
      %p49 = scmp.eq.s32.totalorder %s27, 1
      %p50 = por %p48, %p49
      %p52 = scmp.ne.s32.totalorder %s35, %s51
      %p53 = scmp.eq.s32.totalorder %s27, 0
      %p54 = por %p52, %p53
      %s55 = ssub.s32 %s21, %s28
      %p56 = scmp.eq.s32.totalorder %s55, 0
      %s58 = sadd.s32 %s57, 1
      %s59 = scalar_select %p56, %s57, %s58
      %p62 = pneg %p56
      %p63 = scmp.eq.s32.totalorder %s21, 1
      %p64 = por %p62, %p63
      %p65 = scmp.ne.s32.totalorder %s57, %s60
      %p66 = scmp.eq.s32.totalorder %s21, 0
      %p67 = por %p65, %p66
      %p68 = scmp.ne.s32.totalorder %s57, %s60
      %p69 = scmp.eq.s32.totalorder %s26, 1
      %p70 = por %p68, %p69
      %p71 = scmp.ne.s32.totalorder %s60, %s61
      %p72 = scmp.eq.s32.totalorder %s26, 0
      %p73 = por %p71, %p72
      %p74 = scmp.ne.s32.totalorder %s60, %s61
      %p75 = scmp.eq.s32.totalorder %s27, 1
      %p76 = por %p74, %p75
      %p78 = scmp.ne.s32.totalorder %s61, %s77
      %p79 = scmp.eq.s32.totalorder %s27, 0
      %p80 = por %p78, %p79
      %s81 = ssub.s32 %s21, %s28
      %p82 = scmp.eq.s32.totalorder %s81, 0
      %s84 = sadd.s32 %s83, 1
      %s85 = scalar_select %p82, %s83, %s84
      %p88 = pneg %p82
      %p89 = scmp.eq.s32.totalorder %s21, 1
      %p90 = por %p88, %p89
      %p91 = scmp.ne.s32.totalorder %s83, %s86
      %p92 = scmp.eq.s32.totalorder %s21, 0
      %p93 = por %p91, %p92
      %p94 = scmp.ne.s32.totalorder %s83, %s86
      %p95 = scmp.eq.s32.totalorder %s26, 1
      %p96 = por %p94, %p95
      %p97 = scmp.ne.s32.totalorder %s86, %s87
      %p98 = scmp.eq.s32.totalorder %s26, 0
      %p99 = por %p97, %p98
      %p100 = scmp.ne.s32.totalorder %s86, %s87
      %p101 = scmp.eq.s32.totalorder %s27, 1
      %p102 = por %p100, %p101
      %p104 = scmp.ne.s32.totalorder %s87, %s103
      %p105 = scmp.eq.s32.totalorder %s27, 0
      %p106 = por %p104, %p105
      %s107 = ssub.s32 %s21, %s28
      %p108 = scmp.eq.s32.totalorder %s107, 0
      %s110 = sadd.s32 %s109, 1
      %s111 = scalar_select %p108, %s109, %s110
      %p114 = pneg %p108
      %p115 = scmp.eq.s32.totalorder %s21, 1
      %p116 = por %p114, %p115
      %p117 = scmp.ne.s32.totalorder %s109, %s112
      %p118 = scmp.eq.s32.totalorder %s21, 0
      %p119 = por %p117, %p118
      %p120 = scmp.ne.s32.totalorder %s109, %s112
      %p121 = scmp.eq.s32.totalorder %s26, 1
      %p122 = por %p120, %p121
      %p123 = scmp.ne.s32.totalorder %s112, %s113
      %p124 = scmp.eq.s32.totalorder %s26, 0
      %p125 = por %p123, %p124
      %p126 = scmp.ne.s32.totalorder %s112, %s113
      %p127 = scmp.eq.s32.totalorder %s27, 1
      %p128 = por %p126, %p127
      %p130 = scmp.ne.s32.totalorder %s113, %s129
      %p131 = scmp.eq.s32.totalorder %s27, 0
      %p132 = por %p130, %p131
      %s134 = sadd.s32 %s133, 1
      %p137 = scmp.eq.s32.totalorder %s21, 1
      %p138 = scmp.ne.s32.totalorder %s133, %s135
      %p139 = scmp.eq.s32.totalorder %s21, 0
      %p140 = por %p138, %p139
      %p141 = scmp.ne.s32.totalorder %s133, %s135
      %p142 = scmp.eq.s32.totalorder %s26, 1
      %p143 = por %p141, %p142
      %p144 = scmp.ne.s32.totalorder %s135, %s136
      %p145 = scmp.eq.s32.totalorder %s26, 0
      %p146 = por %p144, %p145
      %p147 = scmp.ne.s32.totalorder %s135, %s136
      %p148 = scmp.eq.s32.totalorder %s27, 1
      %p149 = por %p147, %p148
      %p151 = scmp.ne.s32.totalorder %s136, %s150
      %p152 = scmp.eq.s32.totalorder %s27, 0
      %p153 = por %p151, %p152
      %s155 = sadd.s32 %s154, 1
      %p158 = scmp.eq.s32.totalorder %s21, 1
      %p159 = scmp.ne.s32.totalorder %s154, %s156
      %p160 = scmp.eq.s32.totalorder %s21, 0
      %p161 = por %p159, %p160
      %p162 = scmp.ne.s32.totalorder %s154, %s156
      %p163 = scmp.eq.s32.totalorder %s26, 1
      %p164 = por %p162, %p163
      %p165 = scmp.ne.s32.totalorder %s156, %s157
      %p166 = scmp.eq.s32.totalorder %s26, 0
      %p167 = por %p165, %p166
      %p168 = scmp.ne.s32.totalorder %s156, %s157
      %p169 = scmp.eq.s32.totalorder %s27, 1
      %p170 = por %p168, %p169
      %p172 = scmp.ne.s32.totalorder %s157, %s171
      %p173 = scmp.eq.s32.totalorder %s27, 0
      %p174 = por %p172, %p173
      %s176 = sadd.s32 %s175, 1
      %p179 = scmp.eq.s32.totalorder %s21, 1
      %p180 = scmp.ne.s32.totalorder %s175, %s177
      %p181 = scmp.eq.s32.totalorder %s21, 0
      %p182 = por %p180, %p181
      %p183 = scmp.ne.s32.totalorder %s175, %s177
      %p184 = scmp.eq.s32.totalorder %s26, 1
      %p185 = por %p183, %p184
      %p186 = scmp.ne.s32.totalorder %s177, %s178
      %p187 = scmp.eq.s32.totalorder %s26, 0
      %p188 = por %p186, %p187
      %p189 = scmp.ne.s32.totalorder %s177, %s178
      %p190 = scmp.eq.s32.totalorder %s27, 1
      %p191 = por %p189, %p190
      %p193 = scmp.ne.s32.totalorder %s178, %s192
      %p194 = scmp.eq.s32.totalorder %s27, 0
      %p195 = por %p193, %p194
      %s197 = sadd.s32 %s196, 1
      %p200 = scmp.eq.s32.totalorder %s21, 1
      %p201 = scmp.ne.s32.totalorder %s196, %s198
      %p202 = scmp.eq.s32.totalorder %s21, 0
      %p203 = por %p201, %p202
      %p204 = scmp.ne.s32.totalorder %s196, %s198
      %p205 = scmp.eq.s32.totalorder %s26, 1
      %p206 = por %p204, %p205
      %p207 = scmp.ne.s32.totalorder %s198, %s199
      %p208 = scmp.eq.s32.totalorder %s26, 0
      %p209 = por %p207, %p208
      %p210 = scmp.ne.s32.totalorder %s198, %s199
      %p211 = scmp.eq.s32.totalorder %s27, 1
      %p212 = por %p210, %p211
      %p214 = scmp.ne.s32.totalorder %s199, %s213
      %p215 = scmp.eq.s32.totalorder %s27, 0
      %p216 = por %p214, %p215
      %s218 = sadd.s32 %s217, 1
      %p221 = scmp.eq.s32.totalorder %s21, 1
      %p222 = scmp.ne.s32.totalorder %s217, %s219
      %p223 = scmp.eq.s32.totalorder %s21, 0
      %p224 = por %p222, %p223
      %p225 = scmp.ne.s32.totalorder %s217, %s219
      %p226 = scmp.eq.s32.totalorder %s26, 1
      %p227 = por %p225, %p226
      %p228 = scmp.ne.s32.totalorder %s219, %s220
      %p229 = scmp.eq.s32.totalorder %s26, 0
      %p230 = por %p228, %p229
      %p231 = scmp.ne.s32.totalorder %s219, %s220
      %p232 = scmp.eq.s32.totalorder %s27, 1
      %p233 = por %p231, %p232
      %p235 = scmp.ne.s32.totalorder %s220, %s234
      %p236 = scmp.eq.s32.totalorder %s27, 0
      %p237 = por %p235, %p236
      %s239 = sadd.s32 %s238, 1
      %p242 = scmp.eq.s32.totalorder %s21, 1
      %p243 = scmp.ne.s32.totalorder %s238, %s240
      %p244 = scmp.eq.s32.totalorder %s21, 0
      %p245 = por %p243, %p244
      %p246 = scmp.ne.s32.totalorder %s238, %s240
      %p247 = scmp.eq.s32.totalorder %s26, 1
      %p248 = por %p246, %p247
      %p249 = scmp.ne.s32.totalorder %s240, %s241
      %p250 = scmp.eq.s32.totalorder %s26, 0
      %p251 = por %p249, %p250
      %p252 = scmp.ne.s32.totalorder %s240, %s241
      %p253 = scmp.eq.s32.totalorder %s27, 1
      %p254 = por %p252, %p253
      %p256 = scmp.ne.s32.totalorder %s241, %s255
      %p257 = scmp.eq.s32.totalorder %s27, 0
      %p258 = por %p256, %p257
      %s260 = sadd.s32 %s259, 1
      %p263 = scmp.eq.s32.totalorder %s21, 1
      %p264 = scmp.ne.s32.totalorder %s259, %s261
      %p265 = scmp.eq.s32.totalorder %s21, 0
      %p266 = por %p264, %p265
      %p267 = scmp.ne.s32.totalorder %s259, %s261
      %p268 = scmp.eq.s32.totalorder %s26, 1
      %p269 = por %p267, %p268
      %p270 = scmp.ne.s32.totalorder %s261, %s262
      %p271 = scmp.eq.s32.totalorder %s26, 0
      %p272 = por %p270, %p271
      %p273 = scmp.ne.s32.totalorder %s261, %s262
      %p274 = scmp.eq.s32.totalorder %s27, 1
      %p275 = por %p273, %p274
      %p277 = scmp.ne.s32.totalorder %s262, %s276
      %p278 = scmp.eq.s32.totalorder %s27, 0
      %p279 = por %p277, %p278
      %s281 = sadd.s32 %s280, 1
      %p284 = scmp.eq.s32.totalorder %s21, 1
      %p285 = scmp.ne.s32.totalorder %s280, %s282
      %p286 = scmp.eq.s32.totalorder %s21, 0
      %p287 = por %p285, %p286
      %p288 = scmp.ne.s32.totalorder %s280, %s282
      %p289 = scmp.eq.s32.totalorder %s26, 1
      %p290 = por %p288, %p289
      %p291 = scmp.ne.s32.totalorder %s282, %s283
      %p292 = scmp.eq.s32.totalorder %s26, 0
      %p293 = por %p291, %p292
      %p294 = scmp.ne.s32.totalorder %s282, %s283
      %p295 = scmp.eq.s32.totalorder %s27, 1
      %p296 = por %p294, %p295
      %p298 = scmp.ne.s32.totalorder %s283, %s297
      %p299 = scmp.eq.s32.totalorder %s27, 0
      %p300 = por %p298, %p299
      %s301 = ssub.s32 %s21, %s28
      %p302 = scmp.eq.s32.totalorder %s301, 0
      %s304 = sadd.s32 %s303, 1
      %s305 = scalar_select %p302, %s303, %s304
      %p308 = pneg %p302
      %p309 = scmp.eq.s32.totalorder %s21, 1
      %p310 = por %p308, %p309
      %p311 = scmp.ne.s32.totalorder %s303, %s306
      %p312 = scmp.eq.s32.totalorder %s21, 0
      %p313 = por %p311, %p312
      %p314 = scmp.ne.s32.totalorder %s303, %s306
      %p315 = scmp.eq.s32.totalorder %s26, 1
      %p316 = por %p314, %p315
      %p317 = scmp.ne.s32.totalorder %s306, %s307
      %p318 = scmp.eq.s32.totalorder %s26, 0
      %p319 = por %p317, %p318
      %p320 = scmp.ne.s32.totalorder %s306, %s307
      %p321 = scmp.eq.s32.totalorder %s27, 1
      %p322 = por %p320, %p321
      %p324 = scmp.ne.s32.totalorder %s307, %s323
      %p325 = scmp.eq.s32.totalorder %s27, 0
      %p326 = por %p324, %p325
      %p327 = scmp.le.s32.totalorder 1, %s21
      %p328 = scmp.lt.s32.totalorder %s21, 3
      %p329 = pnand %p327, %p328
      %p330 = pneg %p329
      // Predicated region
      $region9: #{tpu_custom_call.1} parent=5 // pred_check
        _
      $region10: #{tpu_custom_call.1} parent=5 // pred_check_branch
        %332 = sbr.rel (%p329) target = $region12
      $region11: #{tpu_custom_call.1} parent=5 // pred_region
        %s333 = ssub.s32 %s21, 1
        // Predicated region
        $region13: #{tpu_custom_call.1} parent=11 // pred_check
          %p334 = pneg %p146
        $region14: #{tpu_custom_call.1} parent=11 // pred_check_branch
          %336 = sbr.rel (%p334) target = $region16
        $region15: #{tpu_custom_call.1} parent=11 // pred_region
          _
        $region16: #{tpu_custom_call.1} parent=11 // pred_fallthru
          _
        // Predicated region
        $region17: #{tpu_custom_call.1} parent=11 // pred_check
          %p337 = pneg %p167
        $region18: #{tpu_custom_call.1} parent=11 // pred_check_branch
          %339 = sbr.rel (%p337) target = $region20
        $region19: #{tpu_custom_call.1} parent=11 // pred_region
          _
        $region20: #{tpu_custom_call.1} parent=11 // pred_fallthru
          _
        // Predicated region
        $region21: #{tpu_custom_call.1} parent=11 // pred_check
          %p340 = pneg %p188
        $region22: #{tpu_custom_call.1} parent=11 // pred_check_branch
          %342 = sbr.rel (%p340) target = $region24
        $region23: #{tpu_custom_call.1} parent=11 // pred_region
          _
        $region24: #{tpu_custom_call.1} parent=11 // pred_fallthru
          _
        // Predicated region
        $region25: #{tpu_custom_call.1} parent=11 // pred_check
          %p343 = pneg %p209
        $region26: #{tpu_custom_call.1} parent=11 // pred_check_branch
          %345 = sbr.rel (%p343) target = $region28
        $region27: #{tpu_custom_call.1} parent=11 // pred_region
          _
        $region28: #{tpu_custom_call.1} parent=11 // pred_fallthru
          _
        // Predicated region
        $region29: #{tpu_custom_call.1} parent=11 // pred_check
          %p346 = pneg %p230
        $region30: #{tpu_custom_call.1} parent=11 // pred_check_branch
          %348 = sbr.rel (%p346) target = $region32
        $region31: #{tpu_custom_call.1} parent=11 // pred_region
          _
        $region32: #{tpu_custom_call.1} parent=11 // pred_fallthru
          _
        // Predicated region
        $region33: #{tpu_custom_call.1} parent=11 // pred_check
          %p349 = pneg %p251
        $region34: #{tpu_custom_call.1} parent=11 // pred_check_branch
          %351 = sbr.rel (%p349) target = $region36
        $region35: #{tpu_custom_call.1} parent=11 // pred_region
          _
        $region36: #{tpu_custom_call.1} parent=11 // pred_fallthru
          _
        // Predicated region
        $region37: #{tpu_custom_call.1} parent=11 // pred_check
          %p352 = pneg %p272
        $region38: #{tpu_custom_call.1} parent=11 // pred_check_branch
          %354 = sbr.rel (%p352) target = $region40
        $region39: #{tpu_custom_call.1} parent=11 // pred_region
          _
        $region40: #{tpu_custom_call.1} parent=11 // pred_fallthru
          _
        // Predicated region
        $region41: #{tpu_custom_call.1} parent=11 // pred_check
          %p355 = pneg %p293
        $region42: #{tpu_custom_call.1} parent=11 // pred_check_branch
          %357 = sbr.rel (%p355) target = $region44
        $region43: #{tpu_custom_call.1} parent=11 // pred_region
          _
        $region44: #{tpu_custom_call.1} parent=11 // pred_fallthru
          _
      $region12: #{tpu_custom_call.1} parent=5 // pred_fallthru
        _
      %p358 = scmp.lt.s32.totalorder %s21, 2
      // Predicated region
      $region45: #{tpu_custom_call.1} parent=5 // pred_check
        %p359 = pneg %p358
      $region46: #{tpu_custom_call.1} parent=5 // pred_check_branch
        %361 = sbr.rel (%p359) target = $region48
      $region47: #{tpu_custom_call.1} parent=5 // pred_region
        // Predicated region
        $region49: #{tpu_custom_call.1} parent=47 // pred_check
          %p362 = pneg %p41
        $region50: #{tpu_custom_call.1} parent=47 // pred_check_branch
          %364 = sbr.rel (%p362) target = $region52
        $region51: #{tpu_custom_call.1} parent=47 // pred_region
          %p365 = scmp.lt.s32.totalorder %s21, 1
          %s366 = scalar_select %p365, %s21, 1
          %s367 = smul.addr %s366, 8
          %s368 = scalar_lea.vmem %s0, %s367
        $region52: #{tpu_custom_call.1} parent=47 // pred_fallthru
          _
        // Predicated region
        $region53: #{tpu_custom_call.1} parent=47 // pred_check
          %p369 = pneg %p67
        $region54: #{tpu_custom_call.1} parent=47 // pred_check_branch
          %371 = sbr.rel (%p369) target = $region56
        $region55: #{tpu_custom_call.1} parent=47 // pred_region
          %p372 = scmp.lt.s32.totalorder %s21, 1
          %s373 = scalar_select %p372, %s21, 1
          %s374 = smul.addr %s373, 8
          %s375 = scalar_lea.vmem %s1, %s374
        $region56: #{tpu_custom_call.1} parent=47 // pred_fallthru
          _
        // Predicated region
        $region57: #{tpu_custom_call.1} parent=47 // pred_check
          %p376 = pneg %p93
        $region58: #{tpu_custom_call.1} parent=47 // pred_check_branch
          %378 = sbr.rel (%p376) target = $region60
        $region59: #{tpu_custom_call.1} parent=47 // pred_region
          %p379 = scmp.lt.s32.totalorder %s21, 1
          %s380 = scalar_select %p379, %s21, 1
          %s381 = smul.addr %s380, 8
          %s382 = scalar_lea.vmem %s2, %s381
        $region60: #{tpu_custom_call.1} parent=47 // pred_fallthru
          _
        // Predicated region
        $region61: #{tpu_custom_call.1} parent=47 // pred_check
          %p383 = pneg %p119
        $region62: #{tpu_custom_call.1} parent=47 // pred_check_branch
          %385 = sbr.rel (%p383) target = $region64
        $region63: #{tpu_custom_call.1} parent=47 // pred_region
          %p386 = scmp.lt.s32.totalorder %s21, 1
          %s387 = scalar_select %p386, %s21, 1
          %s388 = scalar_lea.vmem %s3, %s387
        $region64: #{tpu_custom_call.1} parent=47 // pred_fallthru
          _
      $region48: #{tpu_custom_call.1} parent=5 // pred_fallthru
        _
      %p389 = scmp.le.s32.totalorder 1, %s21
      %p390 = scmp.lt.s32.totalorder %s21, 3
      %p391 = pnand %p389, %p390
      %p392 = pneg %p391
      // Predicated region
      $region65: #{tpu_custom_call.1} parent=5 // pred_check
        _
      $region66: #{tpu_custom_call.1} parent=5 // pred_check_branch
        %394 = sbr.rel (%p391) target = $region68
      $region67: #{tpu_custom_call.1} parent=5 // pred_region
        %s395 = ssub.s32 %s21, 1
        %p396 = scmp.lt.s32.totalorder %s26, 1
        %s397 = scalar_select %p396, %s26, 1
        %s398 = smul.addr %s397, 8
        %s399 = scalar_lea.vmem %s0, %s398
        %p400 = pneg %p47
        %p401 = pneg %p44
        %p402 = scmp.lt.s32.totalorder %s26, 1
        %s403 = scalar_select %p402, %s26, 1
        %s404 = smul.addr %s403, 8
        %s405 = scalar_lea.vmem %s1, %s404
        %p406 = pneg %p73
        %p407 = pneg %p70
        %p408 = scmp.lt.s32.totalorder %s26, 1
        %s409 = scalar_select %p408, %s26, 1
        %s410 = smul.addr %s409, 8
        %s411 = scalar_lea.vmem %s2, %s410
        %p412 = pneg %p99
        %p413 = pneg %p96
        %p414 = scmp.lt.s32.totalorder %s26, 1
        %s415 = scalar_select %p414, %s26, 1
        %s416 = scalar_lea.vmem %s3, %s415
        %p417 = pneg %p125
        %p418 = pneg %p122
        %p419 = pneg %p146
        %p420 = pneg %p143
        %p421 = pneg %p167
        %p422 = pneg %p164
        %p423 = pneg %p188
        %p424 = pneg %p185
        %p425 = pneg %p209
        %p426 = pneg %p206
        %p427 = pneg %p230
        %p428 = pneg %p227
        %p429 = pneg %p251
        %p430 = pneg %p248
        %p431 = pneg %p272
        %p432 = pneg %p269
        %p433 = pneg %p293
        %p434 = pneg %p290
        %p435 = pneg %p319
        %p436 = pneg %p316
        %s437 = sand.u32 %s306, 1
        %s438 = scalar_lea.sflag [#allocation3], %s437
        %s439 = sand.u32 %s306, 1
        %s440 = smul.addr %s439, 8
        %s441 = scalar_lea.vmem [#allocation2], %s440
        %p442 = scmp.lt.s32.totalorder %s26, 1
        %s443 = scalar_select %p442, %s26, 1
        %s444 = smul.addr %s443, 8
        %s445 = scalar_lea.vmem %s0, %s444
        %p446 = scmp.lt.s32.totalorder %s26, 1
        %s447 = scalar_select %p446, %s26, 1
        %s448 = smul.addr %s447, 8
        %s449 = scalar_lea.vmem %s1, %s448
        %p450 = scmp.lt.s32.totalorder %s26, 1
        %s451 = scalar_select %p450, %s26, 1
        %s452 = smul.addr %s451, 8
        %s453 = scalar_lea.vmem %s2, %s452
        %p454 = scmp.lt.s32.totalorder %s26, 1
        %s455 = scalar_select %p454, %s26, 1
        %s456 = scalar_lea.vmem %s3, %s455
        %v457 = vld [vmem:[%s445] sm:$0xff]
        %v458 = vld [vmem:[%s449] sm:$0xff]
        %v459 = vld [vmem:[%s453] sm:$0xff]
        %v460 = vld [vmem:[%s4] sm:$0xff]
        %v461 = vld [vmem:[%s4 + $0x8] sm:$0xff]
        %v462 = vld [vmem:[%s4 + $0x10] sm:$0xff]
        %v463 = vld [vmem:[%s4 + $0x18] sm:$0xff]
        %v464 = vld [vmem:[%s4 + $0x20] sm:$0xff]
        %v465 = vld [vmem:[%s4 + $0x28] sm:$0xff]
        %v466 = vld [vmem:[%s4 + $0x30] sm:$0xff]
        %v467 = vld [vmem:[%s4 + $0x38] sm:$0xff]
        %v468 = vld [vmem:[%s4 + $0x40] sm:$0xff]
        %v469 = vld [vmem:[%s4 + $0x48] sm:$0xff]
        %v470 = vld [vmem:[%s4 + $0x50] sm:$0xff]
        %v471 = vld [vmem:[%s4 + $0x58] sm:$0xff]
        %v472 = vld [vmem:[%s4 + $0x60] sm:$0xff]
        %v473 = vld [vmem:[%s4 + $0x68] sm:$0xff]
        %v474 = vld [vmem:[%s4 + $0x70] sm:$0xff]
        %v475 = vld [vmem:[%s4 + $0x78] sm:$0xff]
        %v476 = vld [vmem:[%s5] sm:$0x1]
        %v478 = vlaneseq
        %v479 = vshrl.u32 %v478, 7
        %v480 = vsub.s32 0, %v479
        %v481 = vrot.slane %v476, %v480
        %483 = vmatprep.subr.mxu0 0.0
        %484 = vmatpush1.msra.mxu0 %v475
        %485 = vmatprep.subr.mxu0 0.0
        %486 = vmatpush1.msra.mxu0 %v474
        %487 = vmatprep.subr.mxu0 0.0
        %488 = vmatpush1.msra.mxu0 %v473
        %489 = vmatprep.subr.mxu0 0.0
        %490 = vmatpush1.msra.mxu0 %v472
        %491 = vmatprep.subr.mxu0 0.0
        %492 = vmatpush1.msra.mxu0 %v471
        %493 = vmatprep.subr.mxu0 0.0
        %494 = vmatpush1.msra.mxu0 %v470
        %495 = vmatprep.subr.mxu0 0.0
        %496 = vmatpush1.msra.mxu0 %v469
        %497 = vmatprep.subr.mxu0 0.0
        %498 = vmatpush1.msra.mxu0 %v468
        %499 = vmatprep.subr.mxu0 0.0
        %500 = vmatpush1.msra.mxu0 %v467
        %501 = vmatprep.subr.mxu0 0.0
        %502 = vmatpush1.msra.mxu0 %v466
        %503 = vmatprep.subr.mxu0 0.0
        %504 = vmatpush1.msra.mxu0 %v465
        %505 = vmatprep.subr.mxu0 0.0
        %506 = vmatpush1.msra.mxu0 %v464
        %507 = vmatprep.subr.mxu0 0.0
        %508 = vmatpush1.msra.mxu0 %v463
        %509 = vmatprep.subr.mxu0 0.0
        %510 = vmatpush1.msra.mxu0 %v462
        %511 = vmatprep.subr.mxu0 0.0
        %512 = vmatpush1.msra.mxu0 %v461
        %513 = vmatprep.subr.mxu0 0.0
        %514 = vmatpush1.msra.mxu0 %v460
        %515 = vmatprep.subr.mxu0 0.0
        %516 = vmatpush2.msra.mxu0 0.0
        %517 = vmatprep.subr.mxu0 0.0
        %518 = vmatpush2.msra.mxu0 0.0
        %519 = vmatprep.subr.mxu0 0.0
        %520 = vmatpush2.msra.mxu0 0.0
        %521 = vmatprep.subr.mxu0 0.0
        %522 = vmatpush2.msra.mxu0 0.0
        %523 = vmatprep.subr.mxu0 0.0
        %524 = vmatpush2.msra.mxu0 0.0
        %525 = vmatprep.subr.mxu0 0.0
        %526 = vmatpush2.msra.mxu0 0.0
        %527 = vmatprep.subr.mxu0 0.0
        %528 = vmatpush2.msra.mxu0 0.0
        %529 = vmatprep.subr.mxu0 0.0
        %530 = vmatpush2.msra.mxu0 0.0
        %531 = vmatprep.subr.mxu0 0.0
        %532 = vmatpush2.msra.mxu0 0.0
        %533 = vmatprep.subr.mxu0 0.0
        %534 = vmatpush2.msra.mxu0 0.0
        %535 = vmatprep.subr.mxu0 0.0
        %536 = vmatpush2.msra.mxu0 0.0
        %537 = vmatprep.subr.mxu0 0.0
        %538 = vmatpush2.msra.mxu0 0.0
        %539 = vmatprep.subr.mxu0 0.0
        %540 = vmatpush2.msra.mxu0 0.0
        %541 = vmatprep.subr.mxu0 0.0
        %542 = vmatpush2.msra.mxu0 0.0
        %543 = vmatprep.subr.mxu0 0.0
        %544 = vmatpush2.msra.mxu0 0.0
        %545 = vmatprep.subr.mxu0 0.0
        %546 = vmatpush2.msra.mxu0 0.0
        %547 = vmatprep.mubr.f32.mxu0 0.0
        %548 = vmatmul.mubr.f32.gmra.mxu0 %v457
        %v549 = vpop.f32.mrf.mxu0
        %v550 = vadd.f32 %v481, %v549
        %v551 = vpop.f32.mrf.mxu0
        %552 = vdwg.mxu0
        %v553 = vld [vmem:[%s6] sm:$0xff]
        %v554 = vld [vmem:[%s6 + $0x8] sm:$0xff]
        %v555 = vld [vmem:[%s6 + $0x10] sm:$0xff]
        %v556 = vld [vmem:[%s6 + $0x18] sm:$0xff]
        %v557 = vld [vmem:[%s6 + $0x20] sm:$0xff]
        %v558 = vld [vmem:[%s6 + $0x28] sm:$0xff]
        %v559 = vld [vmem:[%s6 + $0x30] sm:$0xff]
        %v560 = vld [vmem:[%s6 + $0x38] sm:$0xff]
        %v561 = vld [vmem:[%s6 + $0x40] sm:$0xff]
        %v562 = vld [vmem:[%s6 + $0x48] sm:$0xff]
        %v563 = vld [vmem:[%s6 + $0x50] sm:$0xff]
        %v564 = vld [vmem:[%s6 + $0x58] sm:$0xff]
        %v565 = vld [vmem:[%s6 + $0x60] sm:$0xff]
        %v566 = vld [vmem:[%s6 + $0x68] sm:$0xff]
        %v567 = vld [vmem:[%s6 + $0x70] sm:$0xff]
        %v568 = vld [vmem:[%s6 + $0x78] sm:$0xff]
        %v569 = vld [vmem:[%s7] sm:$0x1]
        %v571 = vlaneseq
        %v572 = vshrl.u32 %v571, 7
        %v573 = vsub.s32 0, %v572
        %v574 = vrot.slane %v569, %v573
        %576 = vmatprep.subr.mxu0 0.0
        %577 = vmatpush1.msra.mxu0 %v568
        %578 = vmatprep.subr.mxu0 0.0
        %579 = vmatpush1.msra.mxu0 %v567
        %580 = vmatprep.subr.mxu0 0.0
        %581 = vmatpush1.msra.mxu0 %v566
        %582 = vmatprep.subr.mxu0 0.0
        %583 = vmatpush1.msra.mxu0 %v565
        %584 = vmatprep.subr.mxu0 0.0
        %585 = vmatpush1.msra.mxu0 %v564
        %586 = vmatprep.subr.mxu0 0.0
        %587 = vmatpush1.msra.mxu0 %v563
        %588 = vmatprep.subr.mxu0 0.0
        %589 = vmatpush1.msra.mxu0 %v562
        %590 = vmatprep.subr.mxu0 0.0
        %591 = vmatpush1.msra.mxu0 %v561
        %592 = vmatprep.subr.mxu0 0.0
        %593 = vmatpush1.msra.mxu0 %v560
        %594 = vmatprep.subr.mxu0 0.0
        %595 = vmatpush1.msra.mxu0 %v559
        %596 = vmatprep.subr.mxu0 0.0
        %597 = vmatpush1.msra.mxu0 %v558
        %598 = vmatprep.subr.mxu0 0.0
        %599 = vmatpush1.msra.mxu0 %v557
        %600 = vmatprep.subr.mxu0 0.0
        %601 = vmatpush1.msra.mxu0 %v556
        %602 = vmatprep.subr.mxu0 0.0
        %603 = vmatpush1.msra.mxu0 %v555
        %604 = vmatprep.subr.mxu0 0.0
        %605 = vmatpush1.msra.mxu0 %v554
        %606 = vmatprep.subr.mxu0 0.0
        %607 = vmatpush1.msra.mxu0 %v553
        %608 = vmatprep.subr.mxu0 0.0
        %609 = vmatpush2.msra.mxu0 0.0
        %610 = vmatprep.subr.mxu0 0.0
        %611 = vmatpush2.msra.mxu0 0.0
        %612 = vmatprep.subr.mxu0 0.0
        %613 = vmatpush2.msra.mxu0 0.0
        %614 = vmatprep.subr.mxu0 0.0
        %615 = vmatpush2.msra.mxu0 0.0
        %616 = vmatprep.subr.mxu0 0.0
        %617 = vmatpush2.msra.mxu0 0.0
        %618 = vmatprep.subr.mxu0 0.0
        %619 = vmatpush2.msra.mxu0 0.0
        %620 = vmatprep.subr.mxu0 0.0
        %621 = vmatpush2.msra.mxu0 0.0
        %622 = vmatprep.subr.mxu0 0.0
        %623 = vmatpush2.msra.mxu0 0.0
        %624 = vmatprep.subr.mxu0 0.0
        %625 = vmatpush2.msra.mxu0 0.0
        %626 = vmatprep.subr.mxu0 0.0
        %627 = vmatpush2.msra.mxu0 0.0
        %628 = vmatprep.subr.mxu0 0.0
        %629 = vmatpush2.msra.mxu0 0.0
        %630 = vmatprep.subr.mxu0 0.0
        %631 = vmatpush2.msra.mxu0 0.0
        %632 = vmatprep.subr.mxu0 0.0
        %633 = vmatpush2.msra.mxu0 0.0
        %634 = vmatprep.subr.mxu0 0.0
        %635 = vmatpush2.msra.mxu0 0.0
        %636 = vmatprep.subr.mxu0 0.0
        %637 = vmatpush2.msra.mxu0 0.0
        %638 = vmatprep.subr.mxu0 0.0
        %639 = vmatpush2.msra.mxu0 0.0
        %640 = vmatprep.mubr.f32.mxu0 0.0
        %641 = vmatmul.mubr.f32.gmra.mxu0 %v458
        %v642 = vpop.f32.mrf.mxu0
        %v643 = vadd.f32 %v574, %v642
        %v644 = vpop.f32.mrf.mxu0
        %645 = vdwg.mxu0
        %v646 = vld [vmem:[%s8] sm:$0xff]
        %v647 = vld [vmem:[%s8 + $0x8] sm:$0xff]
        %v648 = vld [vmem:[%s8 + $0x10] sm:$0xff]
        %v649 = vld [vmem:[%s8 + $0x18] sm:$0xff]
        %v650 = vld [vmem:[%s8 + $0x20] sm:$0xff]
        %v651 = vld [vmem:[%s8 + $0x28] sm:$0xff]
        %v652 = vld [vmem:[%s8 + $0x30] sm:$0xff]
        %v653 = vld [vmem:[%s8 + $0x38] sm:$0xff]
        %v654 = vld [vmem:[%s8 + $0x40] sm:$0xff]
        %v655 = vld [vmem:[%s8 + $0x48] sm:$0xff]
        %v656 = vld [vmem:[%s8 + $0x50] sm:$0xff]
        %v657 = vld [vmem:[%s8 + $0x58] sm:$0xff]
        %v658 = vld [vmem:[%s8 + $0x60] sm:$0xff]
        %v659 = vld [vmem:[%s8 + $0x68] sm:$0xff]
        %v660 = vld [vmem:[%s8 + $0x70] sm:$0xff]
        %v661 = vld [vmem:[%s8 + $0x78] sm:$0xff]
        %v662 = vld [vmem:[%s9] sm:$0x1]
        %v664 = vlaneseq
        %v665 = vshrl.u32 %v664, 7
        %v666 = vsub.s32 0, %v665
        %v667 = vrot.slane %v662, %v666
        %669 = vmatprep.subr.mxu0 0.0
        %670 = vmatpush1.msra.mxu0 %v661
        %671 = vmatprep.subr.mxu0 0.0
        %672 = vmatpush1.msra.mxu0 %v660
        %673 = vmatprep.subr.mxu0 0.0
        %674 = vmatpush1.msra.mxu0 %v659
        %675 = vmatprep.subr.mxu0 0.0
        %676 = vmatpush1.msra.mxu0 %v658
        %677 = vmatprep.subr.mxu0 0.0
        %678 = vmatpush1.msra.mxu0 %v657
        %679 = vmatprep.subr.mxu0 0.0
        %680 = vmatpush1.msra.mxu0 %v656
        %681 = vmatprep.subr.mxu0 0.0
        %682 = vmatpush1.msra.mxu0 %v655
        %683 = vmatprep.subr.mxu0 0.0
        %684 = vmatpush1.msra.mxu0 %v654
        %685 = vmatprep.subr.mxu0 0.0
        %686 = vmatpush1.msra.mxu0 %v653
        %687 = vmatprep.subr.mxu0 0.0
        %688 = vmatpush1.msra.mxu0 %v652
        %689 = vmatprep.subr.mxu0 0.0
        %690 = vmatpush1.msra.mxu0 %v651
        %691 = vmatprep.subr.mxu0 0.0
        %692 = vmatpush1.msra.mxu0 %v650
        %693 = vmatprep.subr.mxu0 0.0
        %694 = vmatpush1.msra.mxu0 %v649
        %695 = vmatprep.subr.mxu0 0.0
        %696 = vmatpush1.msra.mxu0 %v648
        %697 = vmatprep.subr.mxu0 0.0
        %698 = vmatpush1.msra.mxu0 %v647
        %699 = vmatprep.subr.mxu0 0.0
        %700 = vmatpush1.msra.mxu0 %v646
        %701 = vmatprep.subr.mxu0 0.0
        %702 = vmatpush2.msra.mxu0 0.0
        %703 = vmatprep.subr.mxu0 0.0
        %704 = vmatpush2.msra.mxu0 0.0
        %705 = vmatprep.subr.mxu0 0.0
        %706 = vmatpush2.msra.mxu0 0.0
        %707 = vmatprep.subr.mxu0 0.0
        %708 = vmatpush2.msra.mxu0 0.0
        %709 = vmatprep.subr.mxu0 0.0
        %710 = vmatpush2.msra.mxu0 0.0
        %711 = vmatprep.subr.mxu0 0.0
        %712 = vmatpush2.msra.mxu0 0.0
        %713 = vmatprep.subr.mxu0 0.0
        %714 = vmatpush2.msra.mxu0 0.0
        %715 = vmatprep.subr.mxu0 0.0
        %716 = vmatpush2.msra.mxu0 0.0
        %717 = vmatprep.subr.mxu0 0.0
        %718 = vmatpush2.msra.mxu0 0.0
        %719 = vmatprep.subr.mxu0 0.0
        %720 = vmatpush2.msra.mxu0 0.0
        %721 = vmatprep.subr.mxu0 0.0
        %722 = vmatpush2.msra.mxu0 0.0
        %723 = vmatprep.subr.mxu0 0.0
        %724 = vmatpush2.msra.mxu0 0.0
        %725 = vmatprep.subr.mxu0 0.0
        %726 = vmatpush2.msra.mxu0 0.0
        %727 = vmatprep.subr.mxu0 0.0
        %728 = vmatpush2.msra.mxu0 0.0
        %729 = vmatprep.subr.mxu0 0.0
        %730 = vmatpush2.msra.mxu0 0.0
        %731 = vmatprep.subr.mxu0 0.0
        %732 = vmatpush2.msra.mxu0 0.0
        %733 = vmatprep.mubr.f32.mxu0 0.0
        %734 = vmatmul.mubr.f32.gmra.mxu0 %v459
        %v735 = vpop.f32.mrf.mxu0
        %v736 = vadd.f32 %v667, %v735
        %v737 = vpop.f32.mrf.mxu0
        %738 = vdwg.mxu0
        %v739 = vrcp.pop 4.0
        %v740 = vmul.f32 %v550, %v739
        %v741 = vld [vmem:[%s456] sm:$0x1]
        %vm742 = vcmask 130048
        %v744 = vsel %vm742, %v740, 0
        %v747 = vsel %vm742, %v643, 0
        %749 = vmatprep.subr.mxu0 0.0
        %750 = vmatpush1.xpose.msra.mxu0 0.0
        %751 = vmatprep.subr.mxu0 0.0
        %752 = vmatpush1.xpose.msra.mxu0 0.0
        %753 = vmatprep.subr.mxu0 0.0
        %754 = vmatpush1.xpose.msra.mxu0 0.0
        %755 = vmatprep.subr.mxu0 0.0
        %756 = vmatpush1.xpose.msra.mxu0 0.0
        %757 = vmatprep.subr.mxu0 0.0
        %758 = vmatpush1.xpose.msra.mxu0 0.0
        %759 = vmatprep.subr.mxu0 0.0
        %760 = vmatpush1.xpose.msra.mxu0 0.0
        %761 = vmatprep.subr.mxu0 0.0
        %762 = vmatpush1.xpose.msra.mxu0 0.0
        %763 = vmatprep.subr.mxu0 0.0
        %764 = vmatpush1.xpose.msra.mxu0 0.0
        %765 = vmatprep.subr.mxu0 0.0
        %766 = vmatpush1.xpose.msra.mxu0 0.0
        %767 = vmatprep.subr.mxu0 0.0
        %768 = vmatpush1.xpose.msra.mxu0 0.0
        %769 = vmatprep.subr.mxu0 0.0
        %770 = vmatpush1.xpose.msra.mxu0 0.0
        %771 = vmatprep.subr.mxu0 0.0
        %772 = vmatpush1.xpose.msra.mxu0 0.0
        %773 = vmatprep.subr.mxu0 0.0
        %774 = vmatpush1.xpose.msra.mxu0 0.0
        %775 = vmatprep.subr.mxu0 0.0
        %776 = vmatpush1.xpose.msra.mxu0 0.0
        %777 = vmatprep.subr.mxu0 0.0
        %778 = vmatpush1.xpose.msra.mxu0 0.0
        %779 = vmatprep.subr.mxu0 0.0
        %780 = vmatpush1.xpose.msra.mxu0 %v747
        %781 = vmatprep.subr.mxu0 0.0
        %782 = vmatpush2.xpose.msra.mxu0 0.0
        %783 = vmatprep.subr.mxu0 0.0
        %784 = vmatpush2.xpose.msra.mxu0 0.0
        %785 = vmatprep.subr.mxu0 0.0
        %786 = vmatpush2.xpose.msra.mxu0 0.0
        %787 = vmatprep.subr.mxu0 0.0
        %788 = vmatpush2.xpose.msra.mxu0 0.0
        %789 = vmatprep.subr.mxu0 0.0
        %790 = vmatpush2.xpose.msra.mxu0 0.0
        %791 = vmatprep.subr.mxu0 0.0
        %792 = vmatpush2.xpose.msra.mxu0 0.0
        %793 = vmatprep.subr.mxu0 0.0
        %794 = vmatpush2.xpose.msra.mxu0 0.0
        %795 = vmatprep.subr.mxu0 0.0
        %796 = vmatpush2.xpose.msra.mxu0 0.0
        %797 = vmatprep.subr.mxu0 0.0
        %798 = vmatpush2.xpose.msra.mxu0 0.0
        %799 = vmatprep.subr.mxu0 0.0
        %800 = vmatpush2.xpose.msra.mxu0 0.0
        %801 = vmatprep.subr.mxu0 0.0
        %802 = vmatpush2.xpose.msra.mxu0 0.0
        %803 = vmatprep.subr.mxu0 0.0
        %804 = vmatpush2.xpose.msra.mxu0 0.0
        %805 = vmatprep.subr.mxu0 0.0
        %806 = vmatpush2.xpose.msra.mxu0 0.0
        %807 = vmatprep.subr.mxu0 0.0
        %808 = vmatpush2.xpose.msra.mxu0 0.0
        %809 = vmatprep.subr.mxu0 0.0
        %810 = vmatpush2.xpose.msra.mxu0 0.0
        %811 = vmatprep.subr.mxu0 0.0
        %812 = vmatpush2.xpose.msra.mxu0 0.0
        %813 = vmatprep.mubr.f32.mxu0 0.0
        %814 = vmatmul.mubr.f32.gmra.mxu0 %v744
        %v815 = vpop.f32.mrf.mxu0
        %v816 = vadd.f32 0.0, %v815
        %v817 = vpop.f32.mrf.mxu0
        %818 = vdwg.mxu0
        %vm819 = vcmp.eq.f32.partialorder %v741, 0.0
        %v820 = vsel %vm819, 1, 0
        %v821 = vlaneseq
        %v822 = vshrl.u32 %v821, 7
        %v823 = vsub.s32 0, %v822
        %v824 = vrot.slane %v820, %v823
        %vm825 = vcmp.eq.s32.totalorder %v824, 1
        %v826 = vsel %vm825, -3.4028235e+38, %v816
        %vm827 = vcmask 64512
        %v828 = vsel %vm827, %v826, -inf
        %829 = vmax.xlane.f32.xlu0 %v828
        %v830 = vpop.xlane.xlu0 %829
        %v831 = vsub.f32 %v826, %v830
        %v832 = vmul.f32 %v831, 1.442695
        %v833 = vpow.pop %v832
        %v834 = vsel %vm827, %v833, 0.0
        %835 = vadd.xlane.f32.xlu0 %v834
        %v836 = vpop.xlane.xlu0 %835
        %v837 = vrcp.pop %v836
        %v838 = vmul.f32 %v833, %v837
        %v840 = vsel %vm827, %v838, 0
        %842 = vmatprep.subr.mxu0 0.0
        %843 = vmatpush1.msra.mxu0 0.0
        %844 = vmatprep.subr.mxu0 0.0
        %845 = vmatpush1.msra.mxu0 0.0
        %846 = vmatprep.subr.mxu0 0.0
        %847 = vmatpush1.msra.mxu0 0.0
        %848 = vmatprep.subr.mxu0 0.0
        %849 = vmatpush1.msra.mxu0 0.0
        %850 = vmatprep.subr.mxu0 0.0
        %851 = vmatpush1.msra.mxu0 0.0
        %852 = vmatprep.subr.mxu0 0.0
        %853 = vmatpush1.msra.mxu0 0.0
        %854 = vmatprep.subr.mxu0 0.0
        %855 = vmatpush1.msra.mxu0 0.0
        %856 = vmatprep.subr.mxu0 0.0
        %857 = vmatpush1.msra.mxu0 0.0
        %858 = vmatprep.subr.mxu0 0.0
        %859 = vmatpush1.msra.mxu0 0.0
        %860 = vmatprep.subr.mxu0 0.0
        %861 = vmatpush1.msra.mxu0 0.0
        %862 = vmatprep.subr.mxu0 0.0
        %863 = vmatpush1.msra.mxu0 0.0
        %864 = vmatprep.subr.mxu0 0.0
        %865 = vmatpush1.msra.mxu0 0.0
        %866 = vmatprep.subr.mxu0 0.0
        %867 = vmatpush1.msra.mxu0 0.0
        %868 = vmatprep.subr.mxu0 0.0
        %869 = vmatpush1.msra.mxu0 0.0
        %870 = vmatprep.subr.mxu0 0.0
        %871 = vmatpush1.msra.mxu0 0.0
        %872 = vmatprep.subr.mxu0 0.0
        %873 = vmatpush1.msra.mxu0 %v736
        %874 = vmatprep.subr.mxu0 0.0
        %875 = vmatpush2.msra.mxu0 0.0
        %876 = vmatprep.subr.mxu0 0.0
        %877 = vmatpush2.msra.mxu0 0.0
        %878 = vmatprep.subr.mxu0 0.0
        %879 = vmatpush2.msra.mxu0 0.0
        %880 = vmatprep.subr.mxu0 0.0
        %881 = vmatpush2.msra.mxu0 0.0
        %882 = vmatprep.subr.mxu0 0.0
        %883 = vmatpush2.msra.mxu0 0.0
        %884 = vmatprep.subr.mxu0 0.0
        %885 = vmatpush2.msra.mxu0 0.0
        %886 = vmatprep.subr.mxu0 0.0
        %887 = vmatpush2.msra.mxu0 0.0
        %888 = vmatprep.subr.mxu0 0.0
        %889 = vmatpush2.msra.mxu0 0.0
        %890 = vmatprep.subr.mxu0 0.0
        %891 = vmatpush2.msra.mxu0 0.0
        %892 = vmatprep.subr.mxu0 0.0
        %893 = vmatpush2.msra.mxu0 0.0
        %894 = vmatprep.subr.mxu0 0.0
        %895 = vmatpush2.msra.mxu0 0.0
        %896 = vmatprep.subr.mxu0 0.0
        %897 = vmatpush2.msra.mxu0 0.0
        %898 = vmatprep.subr.mxu0 0.0
        %899 = vmatpush2.msra.mxu0 0.0
        %900 = vmatprep.subr.mxu0 0.0
        %901 = vmatpush2.msra.mxu0 0.0
        %902 = vmatprep.subr.mxu0 0.0
        %903 = vmatpush2.msra.mxu0 0.0
        %904 = vmatprep.subr.mxu0 0.0
        %905 = vmatpush2.msra.mxu0 0.0
        %906 = vmatprep.mubr.f32.mxu0 0.0
        %907 = vmatmul.mubr.f32.gmra.mxu0 %v840
        %v908 = vpop.f32.mrf.mxu0
        %v909 = vadd.f32 0.0, %v908
        %v910 = vpop.f32.mrf.mxu0
        %911 = vdwg.mxu0
        %912 = vrot.lane.b32.xlu0 %v740, 112
        %v913 = vpop.permute.xlu0 %912
        %914 = vrot.lane.b32.xlu0 %v643, 112
        %v915 = vpop.permute.xlu0 %914
        %v916 = vsel %vm742, %v913, 0
        %v918 = vsel %vm742, %v915, 0
        %920 = vmatprep.subr.mxu0 0.0
        %921 = vmatpush1.xpose.msra.mxu0 0.0
        %922 = vmatprep.subr.mxu0 0.0
        %923 = vmatpush1.xpose.msra.mxu0 0.0
        %924 = vmatprep.subr.mxu0 0.0
        %925 = vmatpush1.xpose.msra.mxu0 0.0
        %926 = vmatprep.subr.mxu0 0.0
        %927 = vmatpush1.xpose.msra.mxu0 0.0
        %928 = vmatprep.subr.mxu0 0.0
        %929 = vmatpush1.xpose.msra.mxu0 0.0
        %930 = vmatprep.subr.mxu0 0.0
        %931 = vmatpush1.xpose.msra.mxu0 0.0
        %932 = vmatprep.subr.mxu0 0.0
        %933 = vmatpush1.xpose.msra.mxu0 0.0
        %934 = vmatprep.subr.mxu0 0.0
        %935 = vmatpush1.xpose.msra.mxu0 0.0
        %936 = vmatprep.subr.mxu0 0.0
        %937 = vmatpush1.xpose.msra.mxu0 0.0
        %938 = vmatprep.subr.mxu0 0.0
        %939 = vmatpush1.xpose.msra.mxu0 0.0
        %940 = vmatprep.subr.mxu0 0.0
        %941 = vmatpush1.xpose.msra.mxu0 0.0
        %942 = vmatprep.subr.mxu0 0.0
        %943 = vmatpush1.xpose.msra.mxu0 0.0
        %944 = vmatprep.subr.mxu0 0.0
        %945 = vmatpush1.xpose.msra.mxu0 0.0
        %946 = vmatprep.subr.mxu0 0.0
        %947 = vmatpush1.xpose.msra.mxu0 0.0
        %948 = vmatprep.subr.mxu0 0.0
        %949 = vmatpush1.xpose.msra.mxu0 0.0
        %950 = vmatprep.subr.mxu0 0.0
        %951 = vmatpush1.xpose.msra.mxu0 %v918
        %952 = vmatprep.subr.mxu0 0.0
        %953 = vmatpush2.xpose.msra.mxu0 0.0
        %954 = vmatprep.subr.mxu0 0.0
        %955 = vmatpush2.xpose.msra.mxu0 0.0
        %956 = vmatprep.subr.mxu0 0.0
        %957 = vmatpush2.xpose.msra.mxu0 0.0
        %958 = vmatprep.subr.mxu0 0.0
        %959 = vmatpush2.xpose.msra.mxu0 0.0
        %960 = vmatprep.subr.mxu0 0.0
        %961 = vmatpush2.xpose.msra.mxu0 0.0
        %962 = vmatprep.subr.mxu0 0.0
        %963 = vmatpush2.xpose.msra.mxu0 0.0
        %964 = vmatprep.subr.mxu0 0.0
        %965 = vmatpush2.xpose.msra.mxu0 0.0
        %966 = vmatprep.subr.mxu0 0.0
        %967 = vmatpush2.xpose.msra.mxu0 0.0
        %968 = vmatprep.subr.mxu0 0.0
        %969 = vmatpush2.xpose.msra.mxu0 0.0
        %970 = vmatprep.subr.mxu0 0.0
        %971 = vmatpush2.xpose.msra.mxu0 0.0
        %972 = vmatprep.subr.mxu0 0.0
        %973 = vmatpush2.xpose.msra.mxu0 0.0
        %974 = vmatprep.subr.mxu0 0.0
        %975 = vmatpush2.xpose.msra.mxu0 0.0
        %976 = vmatprep.subr.mxu0 0.0
        %977 = vmatpush2.xpose.msra.mxu0 0.0
        %978 = vmatprep.subr.mxu0 0.0
        %979 = vmatpush2.xpose.msra.mxu0 0.0
        %980 = vmatprep.subr.mxu0 0.0
        %981 = vmatpush2.xpose.msra.mxu0 0.0
        %982 = vmatprep.subr.mxu0 0.0
        %983 = vmatpush2.xpose.msra.mxu0 0.0
        %984 = vmatprep.mubr.f32.mxu0 0.0
        %985 = vmatmul.mubr.f32.gmra.mxu0 %v916
        %v986 = vpop.f32.mrf.mxu0
        %v987 = vadd.f32 0.0, %v986
        %v988 = vpop.f32.mrf.mxu0
        %989 = vdwg.mxu0
        %v990 = vsel %vm825, -3.4028235e+38, %v987
        %v991 = vsel %vm827, %v990, -inf
        %992 = vmax.xlane.f32.xlu0 %v991
        %v993 = vpop.xlane.xlu0 %992
        %v994 = vsub.f32 %v990, %v993
        %v995 = vmul.f32 %v994, 1.442695
        %v996 = vpow.pop %v995
        %v997 = vsel %vm827, %v996, 0.0
        %998 = vadd.xlane.f32.xlu0 %v997
        %v999 = vpop.xlane.xlu0 %998
        %v1000 = vrcp.pop %v999
        %v1001 = vmul.f32 %v996, %v1000
        %1003 = vrot.lane.b32.xlu0 %v736, 112
        %v1004 = vpop.permute.xlu0 %1003
        %v1007 = vsel %vm827, %v1001, 0
        %1009 = vmatprep.subr.mxu0 0.0
        %1010 = vmatpush1.msra.mxu0 0.0
        %1011 = vmatprep.subr.mxu0 0.0
        %1012 = vmatpush1.msra.mxu0 0.0
        %1013 = vmatprep.subr.mxu0 0.0
        %1014 = vmatpush1.msra.mxu0 0.0
        %1015 = vmatprep.subr.mxu0 0.0
        %1016 = vmatpush1.msra.mxu0 0.0
        %1017 = vmatprep.subr.mxu0 0.0
        %1018 = vmatpush1.msra.mxu0 0.0
        %1019 = vmatprep.subr.mxu0 0.0
        %1020 = vmatpush1.msra.mxu0 0.0
        %1021 = vmatprep.subr.mxu0 0.0
        %1022 = vmatpush1.msra.mxu0 0.0
        %1023 = vmatprep.subr.mxu0 0.0
        %1024 = vmatpush1.msra.mxu0 0.0
        %1025 = vmatprep.subr.mxu0 0.0
        %1026 = vmatpush1.msra.mxu0 0.0
        %1027 = vmatprep.subr.mxu0 0.0
        %1028 = vmatpush1.msra.mxu0 0.0
        %1029 = vmatprep.subr.mxu0 0.0
        %1030 = vmatpush1.msra.mxu0 0.0
        %1031 = vmatprep.subr.mxu0 0.0
        %1032 = vmatpush1.msra.mxu0 0.0
        %1033 = vmatprep.subr.mxu0 0.0
        %1034 = vmatpush1.msra.mxu0 0.0
        %1035 = vmatprep.subr.mxu0 0.0
        %1036 = vmatpush1.msra.mxu0 0.0
        %1037 = vmatprep.subr.mxu0 0.0
        %1038 = vmatpush1.msra.mxu0 0.0
        %1039 = vmatprep.subr.mxu0 0.0
        %1040 = vmatpush1.msra.mxu0 %v1004
        %1041 = vmatprep.subr.mxu0 0.0
        %1042 = vmatpush2.msra.mxu0 0.0
        %1043 = vmatprep.subr.mxu0 0.0
        %1044 = vmatpush2.msra.mxu0 0.0
        %1045 = vmatprep.subr.mxu0 0.0
        %1046 = vmatpush2.msra.mxu0 0.0
        %1047 = vmatprep.subr.mxu0 0.0
        %1048 = vmatpush2.msra.mxu0 0.0
        %1049 = vmatprep.subr.mxu0 0.0
        %1050 = vmatpush2.msra.mxu0 0.0
        %1051 = vmatprep.subr.mxu0 0.0
        %1052 = vmatpush2.msra.mxu0 0.0
        %1053 = vmatprep.subr.mxu0 0.0
        %1054 = vmatpush2.msra.mxu0 0.0
        %1055 = vmatprep.subr.mxu0 0.0
        %1056 = vmatpush2.msra.mxu0 0.0
        %1057 = vmatprep.subr.mxu0 0.0
        %1058 = vmatpush2.msra.mxu0 0.0
        %1059 = vmatprep.subr.mxu0 0.0
        %1060 = vmatpush2.msra.mxu0 0.0
        %1061 = vmatprep.subr.mxu0 0.0
        %1062 = vmatpush2.msra.mxu0 0.0
        %1063 = vmatprep.subr.mxu0 0.0
        %1064 = vmatpush2.msra.mxu0 0.0
        %1065 = vmatprep.subr.mxu0 0.0
        %1066 = vmatpush2.msra.mxu0 0.0
        %1067 = vmatprep.subr.mxu0 0.0
        %1068 = vmatpush2.msra.mxu0 0.0
        %1069 = vmatprep.subr.mxu0 0.0
        %1070 = vmatpush2.msra.mxu0 0.0
        %1071 = vmatprep.subr.mxu0 0.0
        %1072 = vmatpush2.msra.mxu0 0.0
        %1073 = vmatprep.mubr.f32.mxu0 0.0
        %1074 = vmatmul.mubr.f32.gmra.mxu0 %v1007
        %v1075 = vpop.f32.mrf.mxu0
        %v1076 = vadd.f32 0.0, %v1075
        %v1077 = vpop.f32.mrf.mxu0
        %1078 = vdwg.mxu0
        %1079 = vrot.lane.b32.xlu0 %v740, 96
        %v1080 = vpop.permute.xlu0 %1079
        %1081 = vrot.lane.b32.xlu0 %v643, 96
        %v1082 = vpop.permute.xlu0 %1081
        %v1083 = vsel %vm742, %v1080, 0
        %v1085 = vsel %vm742, %v1082, 0
        %1087 = vmatprep.subr.mxu0 0.0
        %1088 = vmatpush1.xpose.msra.mxu0 0.0
        %1089 = vmatprep.subr.mxu0 0.0
        %1090 = vmatpush1.xpose.msra.mxu0 0.0
        %1091 = vmatprep.subr.mxu0 0.0
        %1092 = vmatpush1.xpose.msra.mxu0 0.0
        %1093 = vmatprep.subr.mxu0 0.0
        %1094 = vmatpush1.xpose.msra.mxu0 0.0
        %1095 = vmatprep.subr.mxu0 0.0
        %1096 = vmatpush1.xpose.msra.mxu0 0.0
        %1097 = vmatprep.subr.mxu0 0.0
        %1098 = vmatpush1.xpose.msra.mxu0 0.0
        %1099 = vmatprep.subr.mxu0 0.0
        %1100 = vmatpush1.xpose.msra.mxu0 0.0
        %1101 = vmatprep.subr.mxu0 0.0
        %1102 = vmatpush1.xpose.msra.mxu0 0.0
        %1103 = vmatprep.subr.mxu0 0.0
        %1104 = vmatpush1.xpose.msra.mxu0 0.0
        %1105 = vmatprep.subr.mxu0 0.0
        %1106 = vmatpush1.xpose.msra.mxu0 0.0
        %1107 = vmatprep.subr.mxu0 0.0
        %1108 = vmatpush1.xpose.msra.mxu0 0.0
        %1109 = vmatprep.subr.mxu0 0.0
        %1110 = vmatpush1.xpose.msra.mxu0 0.0
        %1111 = vmatprep.subr.mxu0 0.0
        %1112 = vmatpush1.xpose.msra.mxu0 0.0
        %1113 = vmatprep.subr.mxu0 0.0
        %1114 = vmatpush1.xpose.msra.mxu0 0.0
        %1115 = vmatprep.subr.mxu0 0.0
        %1116 = vmatpush1.xpose.msra.mxu0 0.0
        %1117 = vmatprep.subr.mxu0 0.0
        %1118 = vmatpush1.xpose.msra.mxu0 %v1085
        %1119 = vmatprep.subr.mxu0 0.0
        %1120 = vmatpush2.xpose.msra.mxu0 0.0
        %1121 = vmatprep.subr.mxu0 0.0
        %1122 = vmatpush2.xpose.msra.mxu0 0.0
        %1123 = vmatprep.subr.mxu0 0.0
        %1124 = vmatpush2.xpose.msra.mxu0 0.0
        %1125 = vmatprep.subr.mxu0 0.0
        %1126 = vmatpush2.xpose.msra.mxu0 0.0
        %1127 = vmatprep.subr.mxu0 0.0
        %1128 = vmatpush2.xpose.msra.mxu0 0.0
        %1129 = vmatprep.subr.mxu0 0.0
        %1130 = vmatpush2.xpose.msra.mxu0 0.0
        %1131 = vmatprep.subr.mxu0 0.0
        %1132 = vmatpush2.xpose.msra.mxu0 0.0
        %1133 = vmatprep.subr.mxu0 0.0
        %1134 = vmatpush2.xpose.msra.mxu0 0.0
        %1135 = vmatprep.subr.mxu0 0.0
        %1136 = vmatpush2.xpose.msra.mxu0 0.0
        %1137 = vmatprep.subr.mxu0 0.0
        %1138 = vmatpush2.xpose.msra.mxu0 0.0
        %1139 = vmatprep.subr.mxu0 0.0
        %1140 = vmatpush2.xpose.msra.mxu0 0.0
        %1141 = vmatprep.subr.mxu0 0.0
        %1142 = vmatpush2.xpose.msra.mxu0 0.0
        %1143 = vmatprep.subr.mxu0 0.0
        %1144 = vmatpush2.xpose.msra.mxu0 0.0
        %1145 = vmatprep.subr.mxu0 0.0
        %1146 = vmatpush2.xpose.msra.mxu0 0.0
        %1147 = vmatprep.subr.mxu0 0.0
        %1148 = vmatpush2.xpose.msra.mxu0 0.0
        %1149 = vmatprep.subr.mxu0 0.0
        %1150 = vmatpush2.xpose.msra.mxu0 0.0
        %1151 = vmatprep.mubr.f32.mxu0 0.0
        %1152 = vmatmul.mubr.f32.gmra.mxu0 %v1083
        %v1153 = vpop.f32.mrf.mxu0
        %v1154 = vadd.f32 0.0, %v1153
        %v1155 = vpop.f32.mrf.mxu0
        %1156 = vdwg.mxu0
        %v1157 = vsel %vm825, -3.4028235e+38, %v1154
        %v1158 = vsel %vm827, %v1157, -inf
        %1159 = vmax.xlane.f32.xlu0 %v1158
        %v1160 = vpop.xlane.xlu0 %1159
        %v1161 = vsub.f32 %v1157, %v1160
        %v1162 = vmul.f32 %v1161, 1.442695
        %v1163 = vpow.pop %v1162
        %v1164 = vsel %vm827, %v1163, 0.0
        %1165 = vadd.xlane.f32.xlu0 %v1164
        %v1166 = vpop.xlane.xlu0 %1165
        %v1167 = vrcp.pop %v1166
        %v1168 = vmul.f32 %v1163, %v1167
        %1169 = vrot.lane.b32.xlu0 %v736, 96
        %v1170 = vpop.permute.xlu0 %1169
        %v1173 = vsel %vm827, %v1168, 0
        %1175 = vmatprep.subr.mxu0 0.0
        %1176 = vmatpush1.msra.mxu0 0.0
        %1177 = vmatprep.subr.mxu0 0.0
        %1178 = vmatpush1.msra.mxu0 0.0
        %1179 = vmatprep.subr.mxu0 0.0
        %1180 = vmatpush1.msra.mxu0 0.0
        %1181 = vmatprep.subr.mxu0 0.0
        %1182 = vmatpush1.msra.mxu0 0.0
        %1183 = vmatprep.subr.mxu0 0.0
        %1184 = vmatpush1.msra.mxu0 0.0
        %1185 = vmatprep.subr.mxu0 0.0
        %1186 = vmatpush1.msra.mxu0 0.0
        %1187 = vmatprep.subr.mxu0 0.0
        %1188 = vmatpush1.msra.mxu0 0.0
        %1189 = vmatprep.subr.mxu0 0.0
        %1190 = vmatpush1.msra.mxu0 0.0
        %1191 = vmatprep.subr.mxu0 0.0
        %1192 = vmatpush1.msra.mxu0 0.0
        %1193 = vmatprep.subr.mxu0 0.0
        %1194 = vmatpush1.msra.mxu0 0.0
        %1195 = vmatprep.subr.mxu0 0.0
        %1196 = vmatpush1.msra.mxu0 0.0
        %1197 = vmatprep.subr.mxu0 0.0
        %1198 = vmatpush1.msra.mxu0 0.0
        %1199 = vmatprep.subr.mxu0 0.0
        %1200 = vmatpush1.msra.mxu0 0.0
        %1201 = vmatprep.subr.mxu0 0.0
        %1202 = vmatpush1.msra.mxu0 0.0
        %1203 = vmatprep.subr.mxu0 0.0
        %1204 = vmatpush1.msra.mxu0 0.0
        %1205 = vmatprep.subr.mxu0 0.0
        %1206 = vmatpush1.msra.mxu0 %v1170
        %1207 = vmatprep.subr.mxu0 0.0
        %1208 = vmatpush2.msra.mxu0 0.0
        %1209 = vmatprep.subr.mxu0 0.0
        %1210 = vmatpush2.msra.mxu0 0.0
        %1211 = vmatprep.subr.mxu0 0.0
        %1212 = vmatpush2.msra.mxu0 0.0
        %1213 = vmatprep.subr.mxu0 0.0
        %1214 = vmatpush2.msra.mxu0 0.0
        %1215 = vmatprep.subr.mxu0 0.0
        %1216 = vmatpush2.msra.mxu0 0.0
        %1217 = vmatprep.subr.mxu0 0.0
        %1218 = vmatpush2.msra.mxu0 0.0
        %1219 = vmatprep.subr.mxu0 0.0
        %1220 = vmatpush2.msra.mxu0 0.0
        %1221 = vmatprep.subr.mxu0 0.0
        %1222 = vmatpush2.msra.mxu0 0.0
        %1223 = vmatprep.subr.mxu0 0.0
        %1224 = vmatpush2.msra.mxu0 0.0
        %1225 = vmatprep.subr.mxu0 0.0
        %1226 = vmatpush2.msra.mxu0 0.0
        %1227 = vmatprep.subr.mxu0 0.0
        %1228 = vmatpush2.msra.mxu0 0.0
        %1229 = vmatprep.subr.mxu0 0.0
        %1230 = vmatpush2.msra.mxu0 0.0
        %1231 = vmatprep.subr.mxu0 0.0
        %1232 = vmatpush2.msra.mxu0 0.0
        %1233 = vmatprep.subr.mxu0 0.0
        %1234 = vmatpush2.msra.mxu0 0.0
        %1235 = vmatprep.subr.mxu0 0.0
        %1236 = vmatpush2.msra.mxu0 0.0
        %1237 = vmatprep.subr.mxu0 0.0
        %1238 = vmatpush2.msra.mxu0 0.0
        %1239 = vmatprep.mubr.f32.mxu0 0.0
        %1240 = vmatmul.mubr.f32.gmra.mxu0 %v1173
        %v1241 = vpop.f32.mrf.mxu0
        %v1242 = vadd.f32 0.0, %v1241
        %v1243 = vpop.f32.mrf.mxu0
        %1244 = vdwg.mxu0
        %1245 = vrot.lane.b32.xlu0 %v740, 80
        %v1246 = vpop.permute.xlu0 %1245
        %1247 = vrot.lane.b32.xlu0 %v643, 80
        %v1248 = vpop.permute.xlu0 %1247
        %v1249 = vsel %vm742, %v1246, 0
        %v1251 = vsel %vm742, %v1248, 0
        %1253 = vmatprep.subr.mxu0 0.0
        %1254 = vmatpush1.xpose.msra.mxu0 0.0
        %1255 = vmatprep.subr.mxu0 0.0
        %1256 = vmatpush1.xpose.msra.mxu0 0.0
        %1257 = vmatprep.subr.mxu0 0.0
        %1258 = vmatpush1.xpose.msra.mxu0 0.0
        %1259 = vmatprep.subr.mxu0 0.0
        %1260 = vmatpush1.xpose.msra.mxu0 0.0
        %1261 = vmatprep.subr.mxu0 0.0
        %1262 = vmatpush1.xpose.msra.mxu0 0.0
        %1263 = vmatprep.subr.mxu0 0.0
        %1264 = vmatpush1.xpose.msra.mxu0 0.0
        %1265 = vmatprep.subr.mxu0 0.0
        %1266 = vmatpush1.xpose.msra.mxu0 0.0
        %1267 = vmatprep.subr.mxu0 0.0
        %1268 = vmatpush1.xpose.msra.mxu0 0.0
        %1269 = vmatprep.subr.mxu0 0.0
        %1270 = vmatpush1.xpose.msra.mxu0 0.0
        %1271 = vmatprep.subr.mxu0 0.0
        %1272 = vmatpush1.xpose.msra.mxu0 0.0
        %1273 = vmatprep.subr.mxu0 0.0
        %1274 = vmatpush1.xpose.msra.mxu0 0.0
        %1275 = vmatprep.subr.mxu0 0.0
        %1276 = vmatpush1.xpose.msra.mxu0 0.0
        %1277 = vmatprep.subr.mxu0 0.0
        %1278 = vmatpush1.xpose.msra.mxu0 0.0
        %1279 = vmatprep.subr.mxu0 0.0
        %1280 = vmatpush1.xpose.msra.mxu0 0.0
        %1281 = vmatprep.subr.mxu0 0.0
        %1282 = vmatpush1.xpose.msra.mxu0 0.0
        %1283 = vmatprep.subr.mxu0 0.0
        %1284 = vmatpush1.xpose.msra.mxu0 %v1251
        %1285 = vmatprep.subr.mxu0 0.0
        %1286 = vmatpush2.xpose.msra.mxu0 0.0
        %1287 = vmatprep.subr.mxu0 0.0
        %1288 = vmatpush2.xpose.msra.mxu0 0.0
        %1289 = vmatprep.subr.mxu0 0.0
        %1290 = vmatpush2.xpose.msra.mxu0 0.0
        %1291 = vmatprep.subr.mxu0 0.0
        %1292 = vmatpush2.xpose.msra.mxu0 0.0
        %1293 = vmatprep.subr.mxu0 0.0
        %1294 = vmatpush2.xpose.msra.mxu0 0.0
        %1295 = vmatprep.subr.mxu0 0.0
        %1296 = vmatpush2.xpose.msra.mxu0 0.0
        %1297 = vmatprep.subr.mxu0 0.0
        %1298 = vmatpush2.xpose.msra.mxu0 0.0
        %1299 = vmatprep.subr.mxu0 0.0
        %1300 = vmatpush2.xpose.msra.mxu0 0.0
        %1301 = vmatprep.subr.mxu0 0.0
        %1302 = vmatpush2.xpose.msra.mxu0 0.0
        %1303 = vmatprep.subr.mxu0 0.0
        %1304 = vmatpush2.xpose.msra.mxu0 0.0
        %1305 = vmatprep.subr.mxu0 0.0
        %1306 = vmatpush2.xpose.msra.mxu0 0.0
        %1307 = vmatprep.subr.mxu0 0.0
        %1308 = vmatpush2.xpose.msra.mxu0 0.0
        %1309 = vmatprep.subr.mxu0 0.0
        %1310 = vmatpush2.xpose.msra.mxu0 0.0
        %1311 = vmatprep.subr.mxu0 0.0
        %1312 = vmatpush2.xpose.msra.mxu0 0.0
        %1313 = vmatprep.subr.mxu0 0.0
        %1314 = vmatpush2.xpose.msra.mxu0 0.0
        %1315 = vmatprep.subr.mxu0 0.0
        %1316 = vmatpush2.xpose.msra.mxu0 0.0
        %1317 = vmatprep.mubr.f32.mxu0 0.0
        %1318 = vmatmul.mubr.f32.gmra.mxu0 %v1249
        %v1319 = vpop.f32.mrf.mxu0
        %v1320 = vadd.f32 0.0, %v1319
        %v1321 = vpop.f32.mrf.mxu0
        %1322 = vdwg.mxu0
        %v1323 = vsel %vm825, -3.4028235e+38, %v1320
        %v1324 = vsel %vm827, %v1323, -inf
        %1325 = vmax.xlane.f32.xlu0 %v1324
        %v1326 = vpop.xlane.xlu0 %1325
        %v1327 = vsub.f32 %v1323, %v1326
        %v1328 = vmul.f32 %v1327, 1.442695
        %v1329 = vpow.pop %v1328
        %v1330 = vsel %vm827, %v1329, 0.0
        %1331 = vadd.xlane.f32.xlu0 %v1330
        %v1332 = vpop.xlane.xlu0 %1331
        %v1333 = vrcp.pop %v1332
        %v1334 = vmul.f32 %v1329, %v1333
        %1335 = vrot.lane.b32.xlu0 %v736, 80
        %v1336 = vpop.permute.xlu0 %1335
        %v1339 = vsel %vm827, %v1334, 0
        %1341 = vmatprep.subr.mxu0 0.0
        %1342 = vmatpush1.msra.mxu0 0.0
        %1343 = vmatprep.subr.mxu0 0.0
        %1344 = vmatpush1.msra.mxu0 0.0
        %1345 = vmatprep.subr.mxu0 0.0
        %1346 = vmatpush1.msra.mxu0 0.0
        %1347 = vmatprep.subr.mxu0 0.0
        %1348 = vmatpush1.msra.mxu0 0.0
        %1349 = vmatprep.subr.mxu0 0.0
        %1350 = vmatpush1.msra.mxu0 0.0
        %1351 = vmatprep.subr.mxu0 0.0
        %1352 = vmatpush1.msra.mxu0 0.0
        %1353 = vmatprep.subr.mxu0 0.0
        %1354 = vmatpush1.msra.mxu0 0.0
        %1355 = vmatprep.subr.mxu0 0.0
        %1356 = vmatpush1.msra.mxu0 0.0
        %1357 = vmatprep.subr.mxu0 0.0
        %1358 = vmatpush1.msra.mxu0 0.0
        %1359 = vmatprep.subr.mxu0 0.0
        %1360 = vmatpush1.msra.mxu0 0.0
        %1361 = vmatprep.subr.mxu0 0.0
        %1362 = vmatpush1.msra.mxu0 0.0
        %1363 = vmatprep.subr.mxu0 0.0
        %1364 = vmatpush1.msra.mxu0 0.0
        %1365 = vmatprep.subr.mxu0 0.0
        %1366 = vmatpush1.msra.mxu0 0.0
        %1367 = vmatprep.subr.mxu0 0.0
        %1368 = vmatpush1.msra.mxu0 0.0
        %1369 = vmatprep.subr.mxu0 0.0
        %1370 = vmatpush1.msra.mxu0 0.0
        %1371 = vmatprep.subr.mxu0 0.0
        %1372 = vmatpush1.msra.mxu0 %v1336
        %1373 = vmatprep.subr.mxu0 0.0
        %1374 = vmatpush2.msra.mxu0 0.0
        %1375 = vmatprep.subr.mxu0 0.0
        %1376 = vmatpush2.msra.mxu0 0.0
        %1377 = vmatprep.subr.mxu0 0.0
        %1378 = vmatpush2.msra.mxu0 0.0
        %1379 = vmatprep.subr.mxu0 0.0
        %1380 = vmatpush2.msra.mxu0 0.0
        %1381 = vmatprep.subr.mxu0 0.0
        %1382 = vmatpush2.msra.mxu0 0.0
        %1383 = vmatprep.subr.mxu0 0.0
        %1384 = vmatpush2.msra.mxu0 0.0
        %1385 = vmatprep.subr.mxu0 0.0
        %1386 = vmatpush2.msra.mxu0 0.0
        %1387 = vmatprep.subr.mxu0 0.0
        %1388 = vmatpush2.msra.mxu0 0.0
        %1389 = vmatprep.subr.mxu0 0.0
        %1390 = vmatpush2.msra.mxu0 0.0
        %1391 = vmatprep.subr.mxu0 0.0
        %1392 = vmatpush2.msra.mxu0 0.0
        %1393 = vmatprep.subr.mxu0 0.0
        %1394 = vmatpush2.msra.mxu0 0.0
        %1395 = vmatprep.subr.mxu0 0.0
        %1396 = vmatpush2.msra.mxu0 0.0
        %1397 = vmatprep.subr.mxu0 0.0
        %1398 = vmatpush2.msra.mxu0 0.0
        %1399 = vmatprep.subr.mxu0 0.0
        %1400 = vmatpush2.msra.mxu0 0.0
        %1401 = vmatprep.subr.mxu0 0.0
        %1402 = vmatpush2.msra.mxu0 0.0
        %1403 = vmatprep.subr.mxu0 0.0
        %1404 = vmatpush2.msra.mxu0 0.0
        %1405 = vmatprep.mubr.f32.mxu0 0.0
        %1406 = vmatmul.mubr.f32.gmra.mxu0 %v1339
        %v1407 = vpop.f32.mrf.mxu0
        %v1408 = vadd.f32 0.0, %v1407
        %v1409 = vpop.f32.mrf.mxu0
        %1410 = vdwg.mxu0
        %1412 = vrot.lane.b32.xlu0 %v1076, 16
        %v1413 = vpop.permute.xlu0 %1412
        %1416 = vrot.lane.b32.xlu0 %v1242, 32
        %v1417 = vpop.permute.xlu0 %1416
        %1420 = vrot.lane.b32.xlu0 %v1408, 48
        %v1421 = vpop.permute.xlu0 %1420
        %v1423 = vsel %vm742, %v909, %v1413
        %vm1424 = vcmask 261120
        %v1425 = vsel %vm1424, %v1423, %v1417
        %vm1426 = vcmask 392192
        %v1427 = vsel %vm1426, %v1425, %v1421
        %v1428 = vld [vmem:[%s10] sm:$0xff]
        %v1429 = vld [vmem:[%s10 + $0x8] sm:$0xff]
        %v1430 = vld [vmem:[%s10 + $0x10] sm:$0xff]
        %v1431 = vld [vmem:[%s10 + $0x18] sm:$0xff]
        %v1432 = vld [vmem:[%s10 + $0x20] sm:$0xff]
        %v1433 = vld [vmem:[%s10 + $0x28] sm:$0xff]
        %v1434 = vld [vmem:[%s10 + $0x30] sm:$0xff]
        %v1435 = vld [vmem:[%s10 + $0x38] sm:$0xff]
        %v1436 = vld [vmem:[%s11] sm:$0x1]
        %v1438 = vlaneseq
        %v1439 = vshrl.u32 %v1438, 7
        %v1440 = vsub.s32 0, %v1439
        %v1441 = vrot.slane %v1436, %v1440
        %vm1443 = vcmask 523264
        %v1445 = vsel %vm1443, %v1427, 0
        %1447 = vmatprep.subr.mxu0 0.0
        %1448 = vmatpush1.msra.mxu0 0.0
        %1449 = vmatprep.subr.mxu0 0.0
        %1450 = vmatpush1.msra.mxu0 0.0
        %1451 = vmatprep.subr.mxu0 0.0
        %1452 = vmatpush1.msra.mxu0 0.0
        %1453 = vmatprep.subr.mxu0 0.0
        %1454 = vmatpush1.msra.mxu0 0.0
        %1455 = vmatprep.subr.mxu0 0.0
        %1456 = vmatpush1.msra.mxu0 0.0
        %1457 = vmatprep.subr.mxu0 0.0
        %1458 = vmatpush1.msra.mxu0 0.0
        %1459 = vmatprep.subr.mxu0 0.0
        %1460 = vmatpush1.msra.mxu0 0.0
        %1461 = vmatprep.subr.mxu0 0.0
        %1462 = vmatpush1.msra.mxu0 0.0
        %1463 = vmatprep.subr.mxu0 0.0
        %1464 = vmatpush1.msra.mxu0 %v1435
        %1465 = vmatprep.subr.mxu0 0.0
        %1466 = vmatpush1.msra.mxu0 %v1434
        %1467 = vmatprep.subr.mxu0 0.0
        %1468 = vmatpush1.msra.mxu0 %v1433
        %1469 = vmatprep.subr.mxu0 0.0
        %1470 = vmatpush1.msra.mxu0 %v1432
        %1471 = vmatprep.subr.mxu0 0.0
        %1472 = vmatpush1.msra.mxu0 %v1431
        %1473 = vmatprep.subr.mxu0 0.0
        %1474 = vmatpush1.msra.mxu0 %v1430
        %1475 = vmatprep.subr.mxu0 0.0
        %1476 = vmatpush1.msra.mxu0 %v1429
        %1477 = vmatprep.subr.mxu0 0.0
        %1478 = vmatpush1.msra.mxu0 %v1428
        %1479 = vmatprep.subr.mxu0 0.0
        %1480 = vmatpush2.msra.mxu0 0.0
        %1481 = vmatprep.subr.mxu0 0.0
        %1482 = vmatpush2.msra.mxu0 0.0
        %1483 = vmatprep.subr.mxu0 0.0
        %1484 = vmatpush2.msra.mxu0 0.0
        %1485 = vmatprep.subr.mxu0 0.0
        %1486 = vmatpush2.msra.mxu0 0.0
        %1487 = vmatprep.subr.mxu0 0.0
        %1488 = vmatpush2.msra.mxu0 0.0
        %1489 = vmatprep.subr.mxu0 0.0
        %1490 = vmatpush2.msra.mxu0 0.0
        %1491 = vmatprep.subr.mxu0 0.0
        %1492 = vmatpush2.msra.mxu0 0.0
        %1493 = vmatprep.subr.mxu0 0.0
        %1494 = vmatpush2.msra.mxu0 0.0
        %1495 = vmatprep.subr.mxu0 0.0
        %1496 = vmatpush2.msra.mxu0 0.0
        %1497 = vmatprep.subr.mxu0 0.0
        %1498 = vmatpush2.msra.mxu0 0.0
        %1499 = vmatprep.subr.mxu0 0.0
        %1500 = vmatpush2.msra.mxu0 0.0
        %1501 = vmatprep.subr.mxu0 0.0
        %1502 = vmatpush2.msra.mxu0 0.0
        %1503 = vmatprep.subr.mxu0 0.0
        %1504 = vmatpush2.msra.mxu0 0.0
        %1505 = vmatprep.subr.mxu0 0.0
        %1506 = vmatpush2.msra.mxu0 0.0
        %1507 = vmatprep.subr.mxu0 0.0
        %1508 = vmatpush2.msra.mxu0 0.0
        %1509 = vmatprep.subr.mxu0 0.0
        %1510 = vmatpush2.msra.mxu0 0.0
        %1511 = vmatprep.mubr.f32.mxu0 0.0
        %1512 = vmatmul.mubr.f32.gmra.mxu0 %v1445
        %v1513 = vpop.f32.mrf.mxu0
        %v1514 = vadd.f32 %v1441, %v1513
        %v1515 = vpop.f32.mrf.mxu0
        %1516 = vdwg.mxu0
        %1517 = vst [vmem:[%s441] sm:$0xff] %v1514
        %s1518 = sand.u32 %s306, 1
        %s1519 = scalar_lea.sflag [#allocation3], %s1518
        %s1520 = sand.u32 %s306, 1
        %s1521 = smul.addr %s1520, 8
        %s1522 = scalar_lea.vmem [#allocation2], %s1521
        // Predicated region
        $region69: #{tpu_custom_call.1} parent=67 // pred_check
          %p1523 = pneg %p316
        $region70: #{tpu_custom_call.1} parent=67 // pred_check_branch
          %1525 = sbr.rel (%p1523) target = $region72
        $region71: #{tpu_custom_call.1} parent=67 // pred_region
          %s1527 = ssub.s32 128, 128
          %1528 = vsyncadd %s1519, %s1527
          %s1529 = smul.addr %s26, 128
          %s1530 = scalar_lea.hbm %s12, %s1529
          %s1532 = sshll.u32 %s1522, 4
          %s1533 = int_to_ptr.vmem [resolvable:$true] %s1532
          %1535 = dma.vmem_to_hbm [thread:$0]  %s1533, 128, %s1530, %s1519
        $region72: #{tpu_custom_call.1} parent=67 // pred_fallthru
          _
      $region68: #{tpu_custom_call.1} parent=5 // pred_fallthru
        _
      %p1536 = scmp.le.s32.totalorder 2, %s21
      // Predicated region
      $region73: #{tpu_custom_call.1} parent=5 // pred_check
        %p1537 = pneg %p1536
      $region74: #{tpu_custom_call.1} parent=5 // pred_check_branch
        %1539 = sbr.rel (%p1537) target = $region76
      $region75: #{tpu_custom_call.1} parent=5 // pred_region
        %s1540 = ssub.s32 %s21, 2
        // Predicated region
        $region77: #{tpu_custom_call.1} parent=75 // pred_check
          %p1541 = pneg %p322
        $region78: #{tpu_custom_call.1} parent=75 // pred_check_branch
          %1543 = sbr.rel (%p1541) target = $region80
        $region79: #{tpu_custom_call.1} parent=75 // pred_region
          %s1544 = sand.u32 %s307, 1
          %s1545 = scalar_lea.sflag [#allocation3], %s1544
          %s1546 = sand.u32 %s307, 1
          %s1547 = smul.addr %s1546, 8
          %s1548 = scalar_lea.vmem [#allocation2], %s1547
          %1549 = dma.done %s1545, 128
        $region80: #{tpu_custom_call.1} parent=75 // pred_fallthru
          _
      $region76: #{tpu_custom_call.1} parent=5 // pred_fallthru
        _
    $region6: #{tpu_custom_call.1} parent=1 // loop_footer
      %s25 = sadd.s32 1, %s21
    $region7: #{tpu_custom_call.1} parent=1 // loop_footer_branch
      %20 = sbr.rel target = $region3
    $region8: #{tpu_custom_call.1} parent=1 // loop_exit
      _
    %1550 = vsyncpa [#allocation3], 1
    %s1551 = scalar_lea.sflag [#allocation3], 1
    %1552 = vsyncpa %s1551, 1

</llo_original>
